<compile_context>
chip_gen: v7x
topology: tpu7x:2x2x1
jax: 0.10.0
libtpu: 0.0.40
codegen_flags: <defaults>
</compile_context>

<pallas_src>
import jax
import jax.numpy as jnp
from jax.experimental import pallas as pl
from jax.experimental.pallas import tpu as pltpu

C1_OUT, C2_OUT = 32, 49     # conv output channels
K1, K2 = 5, 2               # conv kernel sizes
LANES = 128


# ----------------------------------------------------------------------------
# The single fused kernel.
#   Row convention everywhere: the N*Cin "folded batch" index b is the
#   innermost row digit, spatial indices above it, pool-window index (i,j)
#   outermost (for conv1 patches).  This makes every pool / shift a
#   contiguous static row slice.
# ----------------------------------------------------------------------------
def _wsn_kernel(patches_ref, w1c_ref, b1c_ref, w2c_ref, b2c_ref,
                w1f_ref, b1f_ref, w2f_ref, b2f_ref, w3t_ref, sel_ref, b3_ref,
                y_ref, x2_ref,
                p1_scr, t_scr):
    B = y_ref.shape[0]                 # N * Cin (channel folded into batch)
    N = x2_ref.shape[0]
    q = 25 * B                         # rows per 2x2 pool-window block

    # conv1 (5x5, 1->32) + bias + relu, maxpool fused: the 4 pool-window
    # blocks are contiguous row slabs of the patch matrix, so the pooled
    # result is an elementwise max of 4 block matmuls.
    p1 = None
    for m in range(4):
        blk = jnp.dot(patches_ref[pl.ds(m * q, q), :], w1c_ref[...],
                      preferred_element_type=jnp.float32)
        blk = jnp.maximum(blk + b1c_ref[...], 0.0)     # relu commutes with max
        p1 = blk if p1 is None else jnp.maximum(p1, blk)
    p1_scr[...] = p1                   # (25B,128), rows = (ph*5+pw)*B + b

    # conv2 (2x2, 32->49): 4 accumulating matmuls over shifted contiguous
    # reads of the pooled conv1 scratch (no im2col).
    L = 19 * B                         # covers rows (oh2*5+ow2)*B + b, oh2,ow2<4
    t = jnp.zeros((L, LANES), jnp.float32)
    for idx, (dy, dx) in enumerate(((0, 0), (0, 1), (1, 0), (1, 1))):
        off = (dy * 5 + dx) * B
        t = t + jnp.dot(p1_scr[pl.ds(off, L), :], w2c_ref[idx],
                        preferred_element_type=jnp.float32)
    t_scr[...] = jnp.maximum(t + b2c_ref[...], 0.0)    # relu (pre-pool, same)

    # 2x2 maxpool #2 fused with fc1: for each pooled spatial position s the
    # 4 window rows are contiguous (B,128) slabs of t_scr; accumulate
    # (B,128)@(128,128) against the fc1 weight slice for that position.
    acc = jnp.zeros((B, LANES), jnp.float32)
    for s in range(4):
        p2h, p2w = s // 2, s % 2
        qs = [((2 * p2h + i) * 5 + (2 * p2w + j)) * B
              for i in (0, 1) for j in (0, 1)]
        p2 = jnp.maximum(
            jnp.maximum(t_scr[pl.ds(qs[0], B), :], t_scr[pl.ds(qs[1], B), :]),
            jnp.maximum(t_scr[pl.ds(qs[2], B), :], t_scr[pl.ds(qs[3], B), :]))
        acc = acc + jnp.dot(p2, w1f_ref[s], preferred_element_type=jnp.float32)
    h = jnp.maximum(acc + b1f_ref[...], 0.0)           # relu(fc1)

    # fc2 (no relu) -> lane-dense (B,128) output, lanes 0..9 valid, rest 0.
    y = jnp.dot(h, w2f_ref[...], preferred_element_type=jnp.float32) + b2f_ref[...]
    y_ref[...] = y

    # fc3: per-row weighted lane product, group-sum over the Cin rows of each
    # sample via a tiny selector matmul, then lane reduce + relu + sigmoid.
    v = y * w3t_ref[...]                                            # (B,128)
    grp = jnp.dot(sel_ref[...], v, preferred_element_type=jnp.float32)  # (N,128)
    z = jnp.sum(grp, axis=1, keepdims=True) + b3_ref[...]           # (N,1)
    x2 = jax.nn.sigmoid(jnp.maximum(z, 0.0))
    x2_ref[...] = jnp.broadcast_to(x2, (N, LANES))     # lane-dense store


# ----------------------------------------------------------------------------
# One-time parameter preparation: (K, N) layouts, zero-padded to 128 lanes so
# every in-kernel store is lane-dense (padded lanes stay exactly 0 end-to-end).
# ----------------------------------------------------------------------------
def _pad2(a, rows, cols):
    r, c = a.shape
    return jnp.pad(a, ((0, rows - r), (0, cols - c)))


def prepare_params(params):
    w1c = _pad2(params["conv1_w"].reshape(C1_OUT, K1 * K1).T, K1 * K1, LANES)
    b1c = _pad2(params["conv1_b"].reshape(1, C1_OUT), 1, LANES)
    # conv2: per (dy,dx) a (ci,co) slab, stacked dy-major / dx-minor.
    w2c = jnp.stack([_pad2(params["conv2_w"][:, :, dy, dx].T, LANES, LANES)
                     for dy in range(K2) for dx in range(K2)])      # (4,128,128)
    b2c = _pad2(params["conv2_b"].reshape(1, C2_OUT), 1, LANES)
    # fc1: per pooled spatial position s (feature f = c2*4 + s) a (c2,h) slab.
    w1f = jnp.stack([_pad2(params["fc1_w"][:, s::4].T, LANES, LANES)
                     for s in range(4)])                            # (4,128,128)
    b1f = _pad2(params["fc1_b"].reshape(1, -1), 1, LANES)
    w2f = _pad2(params["fc2_w"].T, LANES, LANES)
    b2f = _pad2(params["fc2_b"].reshape(1, -1), 1, LANES)
    cin = params["fc3_w"].shape[1] // 10
    w3_cin = _pad2(params["fc3_w"].reshape(cin, 10), cin, LANES)    # (Cin,128)
    b3 = params["fc3_b"].reshape(1, 1)
    return dict(w1c=w1c, b1c=b1c, w2c=w2c, b2c=b2c, w1f=w1f, b1f=b1f,
                w2f=w2f, b2f=b2f, w3_cin=w3_cin, b3=b3)


# ----------------------------------------------------------------------------
# WSN forward: one pallas_call, tiny glue on either side.
# ----------------------------------------------------------------------------
def _wsn_forward(inp, p):
    N, Cin, H, W = inp.shape
    assert H == 14 and W == 14, "WSN expects 14x14 spatial input (fc1 sees 196)"
    assert Cin == p["w3_cin"].shape[0], "fc3 expects 10*Cin input features"
    B = N * Cin
    conv_h = H - K1 + 1                                          # 10

    x = inp.reshape(B, H, W)                                     # b = n*Cin + ii

    # conv1 im2col (one-time gather in glue).  Rows ordered (i, j, ph, pw, b)
    # with oh = 2*ph + i, ow = 2*pw + j, so both in-kernel maxpools and the
    # conv2 shifted reads become contiguous row slices.
    cols = jnp.stack([x[:, dy:dy + conv_h, dx:dx + conv_h]
                      for dy in range(K1) for dx in range(K1)], axis=-1)
    cols = cols.reshape(B, 5, 2, 5, 2, K1 * K1)
    patches = jnp.transpose(cols, (2, 4, 1, 3, 0, 5)).reshape(100 * B, K1 * K1)

    w3t = jnp.tile(p["w3_cin"], (N, 1))                           # (B,128)
    sel = jnp.repeat(jnp.eye(N, dtype=jnp.float32), Cin, axis=1)  # (N,B)

    y, x2 = pl.pallas_call(
        _wsn_kernel,
        grid=(1,),
        out_shape=(jax.ShapeDtypeStruct((B, LANES), jnp.float32),
                   jax.ShapeDtypeStruct((N, LANES), jnp.float32)),
        in_specs=[
            pl.BlockSpec((100 * B, K1 * K1), lambda i: (0, 0)),    # patches
            pl.BlockSpec((K1 * K1, LANES), lambda i: (0, 0)),      # w1c
            pl.BlockSpec((1, LANES), lambda i: (0, 0)),            # b1c
            pl.BlockSpec((4, LANES, LANES), lambda i: (0, 0, 0)),  # w2c
            pl.BlockSpec((1, LANES), lambda i: (0, 0)),            # b2c
            pl.BlockSpec((4, LANES, LANES), lambda i: (0, 0, 0)),  # w1f
            pl.BlockSpec((1, LANES), lambda i: (0, 0)),            # b1f
            pl.BlockSpec((LANES, LANES), lambda i: (0, 0)),        # w2f
            pl.BlockSpec((1, LANES), lambda i: (0, 0)),            # b2f
            pl.BlockSpec((B, LANES), lambda i: (0, 0)),            # w3 tiled
            pl.BlockSpec((N, B), lambda i: (0, 0)),                # selector
            pl.BlockSpec((1, 1), lambda i: (0, 0)),                # b3
        ],
        out_specs=(pl.BlockSpec((B, LANES), lambda i: (0, 0)),
                   pl.BlockSpec((N, LANES), lambda i: (0, 0))),
        scratch_shapes=[pltpu.VMEM((25 * B, LANES), jnp.float32),  # pooled conv1
                        pltpu.VMEM((19 * B, LANES), jnp.float32)], # conv2 (relu)
    )(patches, p["w1c"], p["b1c"], p["w2c"], p["b2c"],
      p["w1f"], p["b1f"], p["w2f"], p["b2f"], w3t, sel, p["b3"])

    out = y[:, :10].reshape(N, Cin * 10)    # == PyTorch out[:, ii*10:(ii+1)*10]
    return out, x2[:, :1]


wsn_forward = jax.jit(_wsn_forward)


# ----------------------------------------------------------------------------
# Pure-JAX reference (mirrors the PyTorch module, batch_norm/dropout off).
# ----------------------------------------------------------------------------
def _reference(inp, params):
    N, Cin, H, W = inp.shape
    hp = jax.lax.Precision.HIGHEST
    outs = []
    for ii in range(Cin):
        x = inp[:, ii]                                              # (N,14,14)
        cols = jnp.stack([x[:, dy:dy + 10, dx:dx + 10]
                          for dy in range(5) for dx in range(5)], axis=-1)
        y = jnp.einsum("nhwk,ck->nhwc", cols,
                       params["conv1_w"].reshape(C1_OUT, 25), precision=hp)
        y = y + params["conv1_b"]
        y = y.reshape(N, 5, 2, 5, 2, C1_OUT).max(axis=(2, 4))
        y = jnp.maximum(y, 0.0)                                     # (N,5,5,32)
        y2 = jnp.zeros((N, 4, 4, C2_OUT), jnp.float32) + params["conv2_b"]
        for dy in range(2):
            for dx in range(2):
                y2 = y2 + jnp.einsum("nhwc,oc->nhwo",
                                     y[:, dy:dy + 4, dx:dx + 4, :],
                                     params["conv2_w"][:, :, dy, dx],
                                     precision=hp)
        y2 = y2.reshape(N, 2, 2, 2, 2, C2_OUT).max(axis=(2, 4))
        y2 = jnp.maximum(y2, 0.0)                                   # (N,2,2,49)
        feat = jnp.transpose(y2, (0, 3, 1, 2)).reshape(N, 196)
        h = jnp.maximum(jnp.dot(feat, params["fc1_w"].T, precision=hp)
                        + params["fc1_b"], 0.0)
        outs.append(jnp.dot(h, params["fc2_w"].T, precision=hp)
                    + params["fc2_b"])
    out = jnp.concatenate(outs, axis=1)                             # (N,20)
    z = jnp.dot(out, params["fc3_w"].T, precision=hp) + params["fc3_b"]
    x2 = jax.nn.sigmoid(jnp.maximum(z, 0.0))
    return out, x2


if __name__ == "__main__":
    key = jax.random.PRNGKey(0)
    ks = jax.random.split(key, 11)

    # Deterministic synthetic parameters (PyTorch module shapes).
    params = {
        "conv1_w": jax.random.normal(ks[0], (32, 1, 5, 5), jnp.float32) * 0.05,
        "conv1_b": jax.random.normal(ks[1], (32,), jnp.float32) * 0.05,
        "conv2_w": jax.random.normal(ks[2], (49, 32, 2, 2), jnp.float32) * 0.05,
        "conv2_b": jax.random.normal(ks[3], (49,), jnp.float32) * 0.05,
        "fc1_w": jax.random.normal(ks[4], (100, 196), jnp.float32) * 0.05,
        "fc1_b": jax.random.normal(ks[5], (100,), jnp.float32) * 0.05,
        "fc2_w": jax.random.normal(ks[6], (10, 100), jnp.float32) * 0.05,
        "fc2_b": jax.random.normal(ks[7], (10,), jnp.float32) * 0.05,
        "fc3_w": jax.random.normal(ks[8], (1, 20), jnp.float32) * 0.05,
        "fc3_b": jax.random.normal(ks[9], (1,), jnp.float32) * 0.05,
    }
    prepped = prepare_params(params)   # one-time layout/pad prep (not per call)

    # Input: batch=2, 2 "frame" channels (fc3 expects 20 cols), 14x14 spatial
    # so the flatten after conv2/pool is exactly 196 features.
    inp = jax.random.normal(ks[10], (2, 2, 14, 14), jnp.float32)

    out, x2 = wsn_forward(inp, prepped)
    jax.block_until_ready((out, x2))
    assert out.shape == (2, 20) and x2.shape == (2, 1)

    ref_out, ref_x2 = _reference(inp, params)
    assert float(jnp.max(jnp.abs(out - ref_out))) < 1e-2
    assert float(jnp.max(jnp.abs(x2 - ref_x2))) < 1e-2
    print("KERNEL_OK")
</pallas_src>

<mosaic_0001>
module attributes {stable_mosaic.version = 11 : i64} {
  func.func @_wsn_kernel(%arg0: i32, %arg1: memref<400x25xf32, #tpu.memory_space<vmem>>, %arg2: memref<25x128xf32, #tpu.memory_space<vmem>>, %arg3: memref<1x128xf32, #tpu.memory_space<vmem>>, %arg4: memref<4x128x128xf32, #tpu.memory_space<vmem>>, %arg5: memref<1x128xf32, #tpu.memory_space<vmem>>, %arg6: memref<4x128x128xf32, #tpu.memory_space<vmem>>, %arg7: memref<1x128xf32, #tpu.memory_space<vmem>>, %arg8: memref<128x128xf32, #tpu.memory_space<vmem>>, %arg9: memref<1x128xf32, #tpu.memory_space<vmem>>, %arg10: memref<4x128xf32, #tpu.memory_space<vmem>>, %arg11: memref<2x4xf32, #tpu.memory_space<vmem>>, %arg12: memref<1x1xf32, #tpu.memory_space<vmem>>, %arg13: memref<4x128xf32, #tpu.memory_space<vmem>>, %arg14: memref<2x128xf32, #tpu.memory_space<vmem>>, %arg15: memref<100x128xf32, #tpu.memory_space<vmem>>, %arg16: memref<76x128xf32, #tpu.memory_space<vmem>>) attributes {dimension_semantics = [#tpu.dimension_semantics<arbitrary>], iteration_bounds = array<i64: 1>, scalar_prefetch = 0 : i64, scratch_operands = 2 : i64, tpu.core_type = #tpu.core_type<tc>, window_params = [{pipeline_mode = #tpu.pipeline_mode<synchronous>, transform_indices = @transform_0, window_bounds = array<i64: 400, 25>}, {pipeline_mode = #tpu.pipeline_mode<synchronous>, transform_indices = @transform_1, window_bounds = array<i64: 25, 128>}, {pipeline_mode = #tpu.pipeline_mode<synchronous>, transform_indices = @transform_2, window_bounds = array<i64: 1, 128>}, {pipeline_mode = #tpu.pipeline_mode<synchronous>, transform_indices = @transform_3, window_bounds = array<i64: 4, 128, 128>}, {pipeline_mode = #tpu.pipeline_mode<synchronous>, transform_indices = @transform_4, window_bounds = array<i64: 1, 128>}, {pipeline_mode = #tpu.pipeline_mode<synchronous>, transform_indices = @transform_5, window_bounds = array<i64: 4, 128, 128>}, {pipeline_mode = #tpu.pipeline_mode<synchronous>, transform_indices = @transform_6, window_bounds = array<i64: 1, 128>}, {pipeline_mode = #tpu.pipeline_mode<synchronous>, transform_indices = @transform_7, window_bounds = array<i64: 128, 128>}, {pipeline_mode = #tpu.pipeline_mode<synchronous>, transform_indices = @transform_8, window_bounds = array<i64: 1, 128>}, {pipeline_mode = #tpu.pipeline_mode<synchronous>, transform_indices = @transform_9, window_bounds = array<i64: 4, 128>}, {pipeline_mode = #tpu.pipeline_mode<synchronous>, transform_indices = @transform_10, window_bounds = array<i64: 2, 4>}, {pipeline_mode = #tpu.pipeline_mode<synchronous>, transform_indices = @transform_11, window_bounds = array<i64: 1, 1>}, {pipeline_mode = #tpu.pipeline_mode<synchronous>, transform_indices = @transform_12, window_bounds = array<i64: 4, 128>}, {pipeline_mode = #tpu.pipeline_mode<synchronous>, transform_indices = @transform_13, window_bounds = array<i64: 2, 128>}]} {
    %c0 = arith.constant 0 : index
    %c0_0 = arith.constant 0 : index
    %0 = vector.load %arg1[%c0, %c0_0] : memref<400x25xf32, #tpu.memory_space<vmem>>, vector<100x25xf32>
    %c0_1 = arith.constant 0 : index
    %c0_2 = arith.constant 0 : index
    %1 = vector.load %arg2[%c0_1, %c0_2] : memref<25x128xf32, #tpu.memory_space<vmem>>, vector<25x128xf32>
    %cst = arith.constant dense<0.000000e+00> : vector<100x128xf32>
    %2 = tpu.matmul %0, %1, %cst {dimension_numbers = #tpu.dot_dimension_numbers<[1], [0], [0], [1], [0, 0, 1, 1], [], []>} : vector<100x25xf32>, vector<25x128xf32>, vector<100x128xf32> -> vector<100x128xf32>
    %c0_3 = arith.constant 0 : index
    %c0_4 = arith.constant 0 : index
    %3 = vector.load %arg3[%c0_3, %c0_4] : memref<1x128xf32, #tpu.memory_space<vmem>>, vector<1x128xf32>
    %4 = vector.broadcast %3 : vector<1x128xf32> to vector<100x128xf32>
    %5 = arith.addf %2, %4 : vector<100x128xf32>
    %cst_5 = arith.constant 0.000000e+00 : f32
    %6 = vector.broadcast %cst_5 : f32 to vector<100x128xf32>
    %7 = arith.maximumf %5, %6 : vector<100x128xf32>
    %c100 = arith.constant 100 : index
    %c0_6 = arith.constant 0 : index
    %8 = vector.load %arg1[%c100, %c0_6] : memref<400x25xf32, #tpu.memory_space<vmem>>, vector<100x25xf32>
    %c0_7 = arith.constant 0 : index
    %c0_8 = arith.constant 0 : index
    %9 = vector.load %arg2[%c0_7, %c0_8] : memref<25x128xf32, #tpu.memory_space<vmem>>, vector<25x128xf32>
    %cst_9 = arith.constant dense<0.000000e+00> : vector<100x128xf32>
    %10 = tpu.matmul %8, %9, %cst_9 {dimension_numbers = #tpu.dot_dimension_numbers<[1], [0], [0], [1], [0, 0, 1, 1], [], []>} : vector<100x25xf32>, vector<25x128xf32>, vector<100x128xf32> -> vector<100x128xf32>
    %c0_10 = arith.constant 0 : index
    %c0_11 = arith.constant 0 : index
    %11 = vector.load %arg3[%c0_10, %c0_11] : memref<1x128xf32, #tpu.memory_space<vmem>>, vector<1x128xf32>
    %12 = vector.broadcast %11 : vector<1x128xf32> to vector<100x128xf32>
    %13 = arith.addf %10, %12 : vector<100x128xf32>
    %cst_12 = arith.constant 0.000000e+00 : f32
    %14 = vector.broadcast %cst_12 : f32 to vector<100x128xf32>
    %15 = arith.maximumf %13, %14 : vector<100x128xf32>
    %16 = arith.maximumf %7, %15 : vector<100x128xf32>
    %c200 = arith.constant 200 : index
    %c0_13 = arith.constant 0 : index
    %17 = vector.load %arg1[%c200, %c0_13] : memref<400x25xf32, #tpu.memory_space<vmem>>, vector<100x25xf32>
    %c0_14 = arith.constant 0 : index
    %c0_15 = arith.constant 0 : index
    %18 = vector.load %arg2[%c0_14, %c0_15] : memref<25x128xf32, #tpu.memory_space<vmem>>, vector<25x128xf32>
    %cst_16 = arith.constant dense<0.000000e+00> : vector<100x128xf32>
    %19 = tpu.matmul %17, %18, %cst_16 {dimension_numbers = #tpu.dot_dimension_numbers<[1], [0], [0], [1], [0, 0, 1, 1], [], []>} : vector<100x25xf32>, vector<25x128xf32>, vector<100x128xf32> -> vector<100x128xf32>
    %c0_17 = arith.constant 0 : index
    %c0_18 = arith.constant 0 : index
    %20 = vector.load %arg3[%c0_17, %c0_18] : memref<1x128xf32, #tpu.memory_space<vmem>>, vector<1x128xf32>
    %21 = vector.broadcast %20 : vector<1x128xf32> to vector<100x128xf32>
    %22 = arith.addf %19, %21 : vector<100x128xf32>
    %cst_19 = arith.constant 0.000000e+00 : f32
    %23 = vector.broadcast %cst_19 : f32 to vector<100x128xf32>
    %24 = arith.maximumf %22, %23 : vector<100x128xf32>
    %25 = arith.maximumf %16, %24 : vector<100x128xf32>
    %c300 = arith.constant 300 : index
    %c0_20 = arith.constant 0 : index
    %26 = vector.load %arg1[%c300, %c0_20] : memref<400x25xf32, #tpu.memory_space<vmem>>, vector<100x25xf32>
    %c0_21 = arith.constant 0 : index
    %c0_22 = arith.constant 0 : index
    %27 = vector.load %arg2[%c0_21, %c0_22] : memref<25x128xf32, #tpu.memory_space<vmem>>, vector<25x128xf32>
    %cst_23 = arith.constant dense<0.000000e+00> : vector<100x128xf32>
    %28 = tpu.matmul %26, %27, %cst_23 {dimension_numbers = #tpu.dot_dimension_numbers<[1], [0], [0], [1], [0, 0, 1, 1], [], []>} : vector<100x25xf32>, vector<25x128xf32>, vector<100x128xf32> -> vector<100x128xf32>
    %c0_24 = arith.constant 0 : index
    %c0_25 = arith.constant 0 : index
    %29 = vector.load %arg3[%c0_24, %c0_25] : memref<1x128xf32, #tpu.memory_space<vmem>>, vector<1x128xf32>
    %30 = vector.broadcast %29 : vector<1x128xf32> to vector<100x128xf32>
    %31 = arith.addf %28, %30 : vector<100x128xf32>
    %cst_26 = arith.constant 0.000000e+00 : f32
    %32 = vector.broadcast %cst_26 : f32 to vector<100x128xf32>
    %33 = arith.maximumf %31, %32 : vector<100x128xf32>
    %34 = arith.maximumf %25, %33 : vector<100x128xf32>
    %c0_27 = arith.constant 0 : index
    %c0_28 = arith.constant 0 : index
    %35 = vector.load %arg15[%c0_27, %c0_28] : memref<100x128xf32, #tpu.memory_space<vmem>>, vector<100x128xf32>
    tpu.vector_store %arg15[%c0_27, %c0_28], %34 {strides = array<i32>} : memref<100x128xf32, #tpu.memory_space<vmem>>, vector<100x128xf32>,
    %cst_29 = arith.constant 0.000000e+00 : f32
    %36 = vector.broadcast %cst_29 : f32 to vector<76x128xf32>
    %c0_30 = arith.constant 0 : index
    %c0_31 = arith.constant 0 : index
    %37 = vector.load %arg15[%c0_30, %c0_31] : memref<100x128xf32, #tpu.memory_space<vmem>>, vector<76x128xf32>
    %c0_32 = arith.constant 0 : index
    %c0_33 = arith.constant 0 : index
    %c0_34 = arith.constant 0 : index
    %38 = vector.load %arg4[%c0_32, %c0_33, %c0_34] : memref<4x128x128xf32, #tpu.memory_space<vmem>>, vector<1x128x128xf32>
    %39 = vector.shape_cast %38 : vector<1x128x128xf32> to vector<128x128xf32>
    %cst_35 = arith.constant dense<0.000000e+00> : vector<76x128xf32>
    %40 = tpu.matmul %37, %39, %cst_35 {dimension_numbers = #tpu.dot_dimension_numbers<[1], [0], [0], [1], [0, 0, 1, 1], [], []>} : vector<76x128xf32>, vector<128x128xf32>, vector<76x128xf32> -> vector<76x128xf32>
    %41 = arith.addf %36, %40 : vector<76x128xf32>
    %c4 = arith.constant 4 : index
    %c0_36 = arith.constant 0 : index
    %42 = vector.load %arg15[%c4, %c0_36] : memref<100x128xf32, #tpu.memory_space<vmem>>, vector<76x128xf32>
    %c1 = arith.constant 1 : index
    %c0_37 = arith.constant 0 : index
    %c0_38 = arith.constant 0 : index
    %43 = vector.load %arg4[%c1, %c0_37, %c0_38] : memref<4x128x128xf32, #tpu.memory_space<vmem>>, vector<1x128x128xf32>
    %44 = vector.shape_cast %43 : vector<1x128x128xf32> to vector<128x128xf32>
    %cst_39 = arith.constant dense<0.000000e+00> : vector<76x128xf32>
    %45 = tpu.matmul %42, %44, %cst_39 {dimension_numbers = #tpu.dot_dimension_numbers<[1], [0], [0], [1], [0, 0, 1, 1], [], []>} : vector<76x128xf32>, vector<128x128xf32>, vector<76x128xf32> -> vector<76x128xf32>
    %46 = arith.addf %41, %45 : vector<76x128xf32>
    %c20 = arith.constant 20 : index
    %c0_40 = arith.constant 0 : index
    %47 = vector.load %arg15[%c20, %c0_40] : memref<100x128xf32, #tpu.memory_space<vmem>>, vector<76x128xf32>
    %c2 = arith.constant 2 : index
    %c0_41 = arith.constant 0 : index
    %c0_42 = arith.constant 0 : index
    %48 = vector.load %arg4[%c2, %c0_41, %c0_42] : memref<4x128x128xf32, #tpu.memory_space<vmem>>, vector<1x128x128xf32>
    %49 = vector.shape_cast %48 : vector<1x128x128xf32> to vector<128x128xf32>
    %cst_43 = arith.constant dense<0.000000e+00> : vector<76x128xf32>
    %50 = tpu.matmul %47, %49, %cst_43 {dimension_numbers = #tpu.dot_dimension_numbers<[1], [0], [0], [1], [0, 0, 1, 1], [], []>} : vector<76x128xf32>, vector<128x128xf32>, vector<76x128xf32> -> vector<76x128xf32>
    %51 = arith.addf %46, %50 : vector<76x128xf32>
    %c24 = arith.constant 24 : index
    %c0_44 = arith.constant 0 : index
    %52 = vector.load %arg15[%c24, %c0_44] : memref<100x128xf32, #tpu.memory_space<vmem>>, vector<76x128xf32>
    %c3 = arith.constant 3 : index
    %c0_45 = arith.constant 0 : index
    %c0_46 = arith.constant 0 : index
    %53 = vector.load %arg4[%c3, %c0_45, %c0_46] : memref<4x128x128xf32, #tpu.memory_space<vmem>>, vector<1x128x128xf32>
    %54 = vector.shape_cast %53 : vector<1x128x128xf32> to vector<128x128xf32>
    %cst_47 = arith.constant dense<0.000000e+00> : vector<76x128xf32>
    %55 = tpu.matmul %52, %54, %cst_47 {dimension_numbers = #tpu.dot_dimension_numbers<[1], [0], [0], [1], [0, 0, 1, 1], [], []>} : vector<76x128xf32>, vector<128x128xf32>, vector<76x128xf32> -> vector<76x128xf32>
    %56 = arith.addf %51, %55 : vector<76x128xf32>
    %c0_48 = arith.constant 0 : index
    %c0_49 = arith.constant 0 : index
    %57 = vector.load %arg5[%c0_48, %c0_49] : memref<1x128xf32, #tpu.memory_space<vmem>>, vector<1x128xf32>
    %58 = vector.broadcast %57 : vector<1x128xf32> to vector<76x128xf32>
    %59 = arith.addf %56, %58 : vector<76x128xf32>
    %cst_50 = arith.constant 0.000000e+00 : f32
    %60 = vector.broadcast %cst_50 : f32 to vector<76x128xf32>
    %61 = arith.maximumf %59, %60 : vector<76x128xf32>
    %c0_51 = arith.constant 0 : index
    %c0_52 = arith.constant 0 : index
    %62 = vector.load %arg16[%c0_51, %c0_52] : memref<76x128xf32, #tpu.memory_space<vmem>>, vector<76x128xf32>
    tpu.vector_store %arg16[%c0_51, %c0_52], %61 {strides = array<i32>} : memref<76x128xf32, #tpu.memory_space<vmem>>, vector<76x128xf32>,
    %cst_53 = arith.constant 0.000000e+00 : f32
    %63 = vector.broadcast %cst_53 : f32 to vector<4x128xf32>
    %c0_54 = arith.constant 0 : index
    %c0_55 = arith.constant 0 : index
    %64 = vector.load %arg16[%c0_54, %c0_55] : memref<76x128xf32, #tpu.memory_space<vmem>>, vector<4x128xf32>
    %c4_56 = arith.constant 4 : index
    %c0_57 = arith.constant 0 : index
    %65 = vector.load %arg16[%c4_56, %c0_57] : memref<76x128xf32, #tpu.memory_space<vmem>>, vector<4x128xf32>
    %66 = arith.maximumf %64, %65 : vector<4x128xf32>
    %c20_58 = arith.constant 20 : index
    %c0_59 = arith.constant 0 : index
    %67 = vector.load %arg16[%c20_58, %c0_59] : memref<76x128xf32, #tpu.memory_space<vmem>>, vector<4x128xf32>
    %c24_60 = arith.constant 24 : index
    %c0_61 = arith.constant 0 : index
    %68 = vector.load %arg16[%c24_60, %c0_61] : memref<76x128xf32, #tpu.memory_space<vmem>>, vector<4x128xf32>
    %69 = arith.maximumf %67, %68 : vector<4x128xf32>
    %70 = arith.maximumf %66, %69 : vector<4x128xf32>
    %c0_62 = arith.constant 0 : index
    %c0_63 = arith.constant 0 : index
    %c0_64 = arith.constant 0 : index
    %71 = vector.load %arg6[%c0_62, %c0_63, %c0_64] : memref<4x128x128xf32, #tpu.memory_space<vmem>>, vector<1x128x128xf32>
    %72 = vector.shape_cast %71 : vector<1x128x128xf32> to vector<128x128xf32>
    %cst_65 = arith.constant dense<0.000000e+00> : vector<4x128xf32>
    %73 = tpu.matmul %70, %72, %cst_65 {dimension_numbers = #tpu.dot_dimension_numbers<[1], [0], [0], [1], [0, 0, 1, 1], [], []>} : vector<4x128xf32>, vector<128x128xf32>, vector<4x128xf32> -> vector<4x128xf32>
    %74 = arith.addf %63, %73 : vector<4x128xf32>
    %c8 = arith.constant 8 : index
    %c0_66 = arith.constant 0 : index
    %75 = vector.load %arg16[%c8, %c0_66] : memref<76x128xf32, #tpu.memory_space<vmem>>, vector<4x128xf32>
    %c12 = arith.constant 12 : index
    %c0_67 = arith.constant 0 : index
    %76 = vector.load %arg16[%c12, %c0_67] : memref<76x128xf32, #tpu.memory_space<vmem>>, vector<4x128xf32>
    %77 = arith.maximumf %75, %76 : vector<4x128xf32>
    %c28 = arith.constant 28 : index
    %c0_68 = arith.constant 0 : index
    %78 = vector.load %arg16[%c28, %c0_68] : memref<76x128xf32, #tpu.memory_space<vmem>>, vector<4x128xf32>
    %c32 = arith.constant 32 : index
    %c0_69 = arith.constant 0 : index
    %79 = vector.load %arg16[%c32, %c0_69] : memref<76x128xf32, #tpu.memory_space<vmem>>, vector<4x128xf32>
    %80 = arith.maximumf %78, %79 : vector<4x128xf32>
    %81 = arith.maximumf %77, %80 : vector<4x128xf32>
    %c1_70 = arith.constant 1 : index
    %c0_71 = arith.constant 0 : index
    %c0_72 = arith.constant 0 : index
    %82 = vector.load %arg6[%c1_70, %c0_71, %c0_72] : memref<4x128x128xf32, #tpu.memory_space<vmem>>, vector<1x128x128xf32>
    %83 = vector.shape_cast %82 : vector<1x128x128xf32> to vector<128x128xf32>
    %cst_73 = arith.constant dense<0.000000e+00> : vector<4x128xf32>
    %84 = tpu.matmul %81, %83, %cst_73 {dimension_numbers = #tpu.dot_dimension_numbers<[1], [0], [0], [1], [0, 0, 1, 1], [], []>} : vector<4x128xf32>, vector<128x128xf32>, vector<4x128xf32> -> vector<4x128xf32>
    %85 = arith.addf %74, %84 : vector<4x128xf32>
    %c40 = arith.constant 40 : index
    %c0_74 = arith.constant 0 : index
    %86 = vector.load %arg16[%c40, %c0_74] : memref<76x128xf32, #tpu.memory_space<vmem>>, vector<4x128xf32>
    %c44 = arith.constant 44 : index
    %c0_75 = arith.constant 0 : index
    %87 = vector.load %arg16[%c44, %c0_75] : memref<76x128xf32, #tpu.memory_space<vmem>>, vector<4x128xf32>
    %88 = arith.maximumf %86, %87 : vector<4x128xf32>
    %c60 = arith.constant 60 : index
    %c0_76 = arith.constant 0 : index
    %89 = vector.load %arg16[%c60, %c0_76] : memref<76x128xf32, #tpu.memory_space<vmem>>, vector<4x128xf32>
    %c64 = arith.constant 64 : index
    %c0_77 = arith.constant 0 : index
    %90 = vector.load %arg16[%c64, %c0_77] : memref<76x128xf32, #tpu.memory_space<vmem>>, vector<4x128xf32>
    %91 = arith.maximumf %89, %90 : vector<4x128xf32>
    %92 = arith.maximumf %88, %91 : vector<4x128xf32>
    %c2_78 = arith.constant 2 : index
    %c0_79 = arith.constant 0 : index
    %c0_80 = arith.constant 0 : index
    %93 = vector.load %arg6[%c2_78, %c0_79, %c0_80] : memref<4x128x128xf32, #tpu.memory_space<vmem>>, vector<1x128x128xf32>
    %94 = vector.shape_cast %93 : vector<1x128x128xf32> to vector<128x128xf32>
    %cst_81 = arith.constant dense<0.000000e+00> : vector<4x128xf32>
    %95 = tpu.matmul %92, %94, %cst_81 {dimension_numbers = #tpu.dot_dimension_numbers<[1], [0], [0], [1], [0, 0, 1, 1], [], []>} : vector<4x128xf32>, vector<128x128xf32>, vector<4x128xf32> -> vector<4x128xf32>
    %96 = arith.addf %85, %95 : vector<4x128xf32>
    %c48 = arith.constant 48 : index
    %c0_82 = arith.constant 0 : index
    %97 = vector.load %arg16[%c48, %c0_82] : memref<76x128xf32, #tpu.memory_space<vmem>>, vector<4x128xf32>
    %c52 = arith.constant 52 : index
    %c0_83 = arith.constant 0 : index
    %98 = vector.load %arg16[%c52, %c0_83] : memref<76x128xf32, #tpu.memory_space<vmem>>, vector<4x128xf32>
    %99 = arith.maximumf %97, %98 : vector<4x128xf32>
    %c68 = arith.constant 68 : index
    %c0_84 = arith.constant 0 : index
    %100 = vector.load %arg16[%c68, %c0_84] : memref<76x128xf32, #tpu.memory_space<vmem>>, vector<4x128xf32>
    %c72 = arith.constant 72 : index
    %c0_85 = arith.constant 0 : index
    %101 = vector.load %arg16[%c72, %c0_85] : memref<76x128xf32, #tpu.memory_space<vmem>>, vector<4x128xf32>
    %102 = arith.maximumf %100, %101 : vector<4x128xf32>
    %103 = arith.maximumf %99, %102 : vector<4x128xf32>
    %c3_86 = arith.constant 3 : index
    %c0_87 = arith.constant 0 : index
    %c0_88 = arith.constant 0 : index
    %104 = vector.load %arg6[%c3_86, %c0_87, %c0_88] : memref<4x128x128xf32, #tpu.memory_space<vmem>>, vector<1x128x128xf32>
    %105 = vector.shape_cast %104 : vector<1x128x128xf32> to vector<128x128xf32>
    %cst_89 = arith.constant dense<0.000000e+00> : vector<4x128xf32>
    %106 = tpu.matmul %103, %105, %cst_89 {dimension_numbers = #tpu.dot_dimension_numbers<[1], [0], [0], [1], [0, 0, 1, 1], [], []>} : vector<4x128xf32>, vector<128x128xf32>, vector<4x128xf32> -> vector<4x128xf32>
    %107 = arith.addf %96, %106 : vector<4x128xf32>
    %c0_90 = arith.constant 0 : index
    %c0_91 = arith.constant 0 : index
    %108 = vector.load %arg7[%c0_90, %c0_91] : memref<1x128xf32, #tpu.memory_space<vmem>>, vector<1x128xf32>
    %109 = vector.broadcast %108 : vector<1x128xf32> to vector<4x128xf32>
    %110 = arith.addf %107, %109 : vector<4x128xf32>
    %cst_92 = arith.constant 0.000000e+00 : f32
    %111 = vector.broadcast %cst_92 : f32 to vector<4x128xf32>
    %112 = arith.maximumf %110, %111 : vector<4x128xf32>
    %c0_93 = arith.constant 0 : index
    %c0_94 = arith.constant 0 : index
    %113 = vector.load %arg8[%c0_93, %c0_94] : memref<128x128xf32, #tpu.memory_space<vmem>>, vector<128x128xf32>
    %cst_95 = arith.constant dense<0.000000e+00> : vector<4x128xf32>
    %114 = tpu.matmul %112, %113, %cst_95 {dimension_numbers = #tpu.dot_dimension_numbers<[1], [0], [0], [1], [0, 0, 1, 1], [], []>} : vector<4x128xf32>, vector<128x128xf32>, vector<4x128xf32> -> vector<4x128xf32>
    %c0_96 = arith.constant 0 : index
    %c0_97 = arith.constant 0 : index
    %115 = vector.load %arg9[%c0_96, %c0_97] : memref<1x128xf32, #tpu.memory_space<vmem>>, vector<1x128xf32>
    %116 = vector.broadcast %115 : vector<1x128xf32> to vector<4x128xf32>
    %117 = arith.addf %114, %116 : vector<4x128xf32>
    %c0_98 = arith.constant 0 : index
    %c0_99 = arith.constant 0 : index
    %118 = vector.load %arg13[%c0_98, %c0_99] : memref<4x128xf32, #tpu.memory_space<vmem>>, vector<4x128xf32>
    tpu.vector_store %arg13[%c0_98, %c0_99], %117 {strides = array<i32>} : memref<4x128xf32, #tpu.memory_space<vmem>>, vector<4x128xf32>,
    %c0_100 = arith.constant 0 : index
    %c0_101 = arith.constant 0 : index
    %119 = vector.load %arg10[%c0_100, %c0_101] : memref<4x128xf32, #tpu.memory_space<vmem>>, vector<4x128xf32>
    %120 = arith.mulf %117, %119 : vector<4x128xf32>
    %c0_102 = arith.constant 0 : index
    %c0_103 = arith.constant 0 : index
    %121 = vector.load %arg11[%c0_102, %c0_103] : memref<2x4xf32, #tpu.memory_space<vmem>>, vector<2x4xf32>
    %cst_104 = arith.constant dense<0.000000e+00> : vector<2x128xf32>
    %122 = tpu.matmul %121, %120, %cst_104 {dimension_numbers = #tpu.dot_dimension_numbers<[1], [0], [0], [1], [0, 0, 1, 1], [], []>} : vector<2x4xf32>, vector<4x128xf32>, vector<2x128xf32> -> vector<2x128xf32>
    %cst_105 = arith.constant dense<0.000000e+00> : vector<2xf32>
    %123 = vector.multi_reduction <add>, %122, %cst_105 [1] : vector<2x128xf32> to vector<2xf32>
    %124 = vector.shape_cast %123 : vector<2xf32> to vector<2x1xf32>
    %c0_106 = arith.constant 0 : index
    %c0_107 = arith.constant 0 : index
    %125 = vector.load %arg12[%c0_106, %c0_107] : memref<1x1xf32, #tpu.memory_space<vmem>>, vector<1x1xf32>
    %126 = vector.broadcast %125 : vector<1x1xf32> to vector<2x1xf32>
    %127 = arith.addf %124, %126 : vector<2x1xf32>
    %cst_108 = arith.constant 0.000000e+00 : f32
    %128 = vector.broadcast %cst_108 : f32 to vector<2x1xf32>
    %129 = arith.maximumf %127, %128 : vector<2x1xf32>
    %130 = arith.negf %129 : vector<2x1xf32>
    %131 = math.exp %130 : vector<2x1xf32>
    %cst_109 = arith.constant 1.000000e+00 : f32
    %132 = vector.broadcast %cst_109 : f32 to vector<2x1xf32>
    %133 = arith.addf %132, %131 : vector<2x1xf32>
    %134 = arith.divf %132, %133 : vector<2x1xf32>
    %135 = vector.shape_cast %134 : vector<2x1xf32> to vector<2x1xf32>
    %136 = vector.broadcast %135 : vector<2x1xf32> to vector<2x128xf32>
    %c0_110 = arith.constant 0 : index
    %c0_111 = arith.constant 0 : index
    %137 = vector.load %arg14[%c0_110, %c0_111] : memref<2x128xf32, #tpu.memory_space<vmem>>, vector<2x128xf32>
    tpu.vector_store %arg14[%c0_110, %c0_111], %136 {strides = array<i32>} : memref<2x128xf32, #tpu.memory_space<vmem>>, vector<2x128xf32>,
    return
  }
  func.func @transform_0(%arg0: i32) -> (i32, i32) {
    %c0_i32 = arith.constant 0 : i32
    %c0_i32_0 = arith.constant 0 : i32
    %c0_i32_1 = arith.constant 0 : i32
    return %c0_i32, %c0_i32_0 : i32, i32
  }
  func.func @transform_1(%arg0: i32) -> (i32, i32) {
    %c0_i32 = arith.constant 0 : i32
    %c0_i32_0 = arith.constant 0 : i32
    %c0_i32_1 = arith.constant 0 : i32
    return %c0_i32, %c0_i32_0 : i32, i32
  }
  func.func @transform_2(%arg0: i32) -> (i32, i32) {
    %c0_i32 = arith.constant 0 : i32
    %c0_i32_0 = arith.constant 0 : i32
    %c0_i32_1 = arith.constant 0 : i32
    return %c0_i32, %c0_i32_0 : i32, i32
  }
  func.func @transform_3(%arg0: i32) -> (i32, i32, i32) {
    %c0_i32 = arith.constant 0 : i32
    %c0_i32_0 = arith.constant 0 : i32
    %c0_i32_1 = arith.constant 0 : i32
    %c0_i32_2 = arith.constant 0 : i32
    return %c0_i32, %c0_i32_0, %c0_i32_1 : i32, i32, i32
  }
  func.func @transform_4(%arg0: i32) -> (i32, i32) {
    %c0_i32 = arith.constant 0 : i32
    %c0_i32_0 = arith.constant 0 : i32
    %c0_i32_1 = arith.constant 0 : i32
    return %c0_i32, %c0_i32_0 : i32, i32
  }
  func.func @transform_5(%arg0: i32) -> (i32, i32, i32) {
    %c0_i32 = arith.constant 0 : i32
    %c0_i32_0 = arith.constant 0 : i32
    %c0_i32_1 = arith.constant 0 : i32
    %c0_i32_2 = arith.constant 0 : i32
    return %c0_i32, %c0_i32_0, %c0_i32_1 : i32, i32, i32
  }
  func.func @transform_6(%arg0: i32) -> (i32, i32) {
    %c0_i32 = arith.constant 0 : i32
    %c0_i32_0 = arith.constant 0 : i32
    %c0_i32_1 = arith.constant 0 : i32
    return %c0_i32, %c0_i32_0 : i32, i32
  }
  func.func @transform_7(%arg0: i32) -> (i32, i32) {
    %c0_i32 = arith.constant 0 : i32
    %c0_i32_0 = arith.constant 0 : i32
    %c0_i32_1 = arith.constant 0 : i32
    return %c0_i32, %c0_i32_0 : i32, i32
  }
  func.func @transform_8(%arg0: i32) -> (i32, i32) {
    %c0_i32 = arith.constant 0 : i32
    %c0_i32_0 = arith.constant 0 : i32
    %c0_i32_1 = arith.constant 0 : i32
    return %c0_i32, %c0_i32_0 : i32, i32
  }
  func.func @transform_9(%arg0: i32) -> (i32, i32) {
    %c0_i32 = arith.constant 0 : i32
    %c0_i32_0 = arith.constant 0 : i32
    %c0_i32_1 = arith.constant 0 : i32
    return %c0_i32, %c0_i32_0 : i32, i32
  }
  func.func @transform_10(%arg0: i32) -> (i32, i32) {
    %c0_i32 = arith.constant 0 : i32
    %c0_i32_0 = arith.constant 0 : i32
    %c0_i32_1 = arith.constant 0 : i32
    return %c0_i32, %c0_i32_0 : i32, i32
  }
  func.func @transform_11(%arg0: i32) -> (i32, i32) {
    %c0_i32 = arith.constant 0 : i32
    %c0_i32_0 = arith.constant 0 : i32
    %c0_i32_1 = arith.constant 0 : i32
    return %c0_i32, %c0_i32_0 : i32, i32
  }
  func.func @transform_12(%arg0: i32) -> (i32, i32) {
    %c0_i32 = arith.constant 0 : i32
    %c0_i32_0 = arith.constant 0 : i32
    %c0_i32_1 = arith.constant 0 : i32
    return %c0_i32, %c0_i32_0 : i32, i32
  }
  func.func @transform_13(%arg0: i32) -> (i32, i32) {
    %c0_i32 = arith.constant 0 : i32
    %c0_i32_0 = arith.constant 0 : i32
    %c0_i32_1 = arith.constant 0 : i32
    return %c0_i32, %c0_i32_0 : i32, i32
  }
}

</mosaic_0001>

<llo_original>
// kernel: _wsn_forward.1
$region0: #{_wsn_forward.1}
  #allocation0 [shape = 'u32[]', space=smem, size = 0x4, offset = 0x4, fixed_abs, tag = 'smem constant byte address 0x4 - core index']
  #allocation1 [shape = 'u32[144,128]{1,0:T(1,128)}', space=vmem, size = 0x12000, scoped, tag = 'internal scratch']
  #allocation2 [shape = 'f32[100,128]{1,0:T(8,128)}', space=vmem, size = 0xd000, scoped, tag = 'scratch operand']
  #allocation3 [shape = 'f32[76,128]{1,0:T(8,128)}', space=vmem, size = 0xa000, scoped, tag = 'scratch operand']
  #allocation4 [shape = 'f32[1,1]{1,0:T(1,128)S(1)}', space=vmem, size = 0x200, scoped, tag = 'scoped memory for _wsn_forward.1']
  %s0 = inlined_call_operand.vmem [shape: f32[400,25], index: 0, kind: input, shape index: {}]
  %s1 = inlined_call_operand.vmem [shape: f32[25,128], index: 1, kind: input, shape index: {}]
  %s2 = inlined_call_operand.vmem [shape: f32[1,128], index: 2, kind: input, shape index: {}]
  %s3 = inlined_call_operand.vmem [shape: f32[4,128,128], index: 3, kind: input, shape index: {}]
  %s4 = inlined_call_operand.vmem [shape: f32[1,128], index: 4, kind: input, shape index: {}]
  %s5 = inlined_call_operand.vmem [shape: f32[4,128,128], index: 5, kind: input, shape index: {}]
  %s6 = inlined_call_operand.vmem [shape: f32[1,128], index: 6, kind: input, shape index: {}]
  %s7 = inlined_call_operand.vmem [shape: f32[128,128], index: 7, kind: input, shape index: {}]
  %s8 = inlined_call_operand.vmem [shape: f32[1,128], index: 8, kind: input, shape index: {}]
  %s9 = inlined_call_operand.vmem [shape: f32[4,128], index: 9, kind: input, shape index: {}]
  %s10 = inlined_call_operand.vmem [shape: f32[2,4], index: 10, kind: input, shape index: {}]
  %s11 = inlined_call_operand.<no memory space> [shape: f32[1,1], index: 11, kind: input, shape index: {}]
  %s12 = inlined_call_operand.vmem [shape: f32[4,128], index: 12, kind: output, shape index: {0}]
  %s13 = inlined_call_operand.vmem [shape: f32[2,128], index: 13, kind: output, shape index: {1}]
  %14 = xla_tuple %s12, %s13
  %s15 = sld [smem:[#allocation0]]
  $region66: #{_wsn_forward.1} parent=0
    _
  %s17 = ssub.s32 1, %s15
  %s18 = scalar_select 0, %s17, %s15
  %v19 = vstv %s11
  %20 = vst [vmem:[#allocation4] sm:$0x1] %v19
  // Predicated region
  $region2: #{_wsn_forward.1} parent=0 // pred_check
    _
  $region3: #{_wsn_forward.1} parent=0 // pred_check_branch
    %22 = sbr.rel (0) target = $region5
  $region4: #{_wsn_forward.1} parent=0 // pred_region
    _
  $region5: #{_wsn_forward.1} parent=0 // pred_fallthru
    _
  // Predicated region
  $region6: #{_wsn_forward.1} parent=0 // pred_check
    _
  $region7: #{_wsn_forward.1} parent=0 // pred_check_branch
    %24 = sbr.rel (0) target = $region9
  $region8: #{_wsn_forward.1} parent=0 // pred_region
    _
  $region9: #{_wsn_forward.1} parent=0 // pred_fallthru
    _
  // Predicated region
  $region10: #{_wsn_forward.1} parent=0 // pred_check
    _
  $region11: #{_wsn_forward.1} parent=0 // pred_check_branch
    %26 = sbr.rel (0) target = $region13
  $region12: #{_wsn_forward.1} parent=0 // pred_region
    _
  $region13: #{_wsn_forward.1} parent=0 // pred_fallthru
    _
  // Predicated region
  $region14: #{_wsn_forward.1} parent=0 // pred_check
    _
  $region15: #{_wsn_forward.1} parent=0 // pred_check_branch
    %28 = sbr.rel (0) target = $region17
  $region16: #{_wsn_forward.1} parent=0 // pred_region
    _
  $region17: #{_wsn_forward.1} parent=0 // pred_fallthru
    _
  // Predicated region
  $region18: #{_wsn_forward.1} parent=0 // pred_check
    _
  $region19: #{_wsn_forward.1} parent=0 // pred_check_branch
    %30 = sbr.rel (0) target = $region21
  $region20: #{_wsn_forward.1} parent=0 // pred_region
    _
  $region21: #{_wsn_forward.1} parent=0 // pred_fallthru
    _
  // Predicated region
  $region22: #{_wsn_forward.1} parent=0 // pred_check
    _
  $region23: #{_wsn_forward.1} parent=0 // pred_check_branch
    %32 = sbr.rel (0) target = $region25
  $region24: #{_wsn_forward.1} parent=0 // pred_region
    _
  $region25: #{_wsn_forward.1} parent=0 // pred_fallthru
    _
  // Predicated region
  $region26: #{_wsn_forward.1} parent=0 // pred_check
    _
  $region27: #{_wsn_forward.1} parent=0 // pred_check_branch
    %34 = sbr.rel (0) target = $region29
  $region28: #{_wsn_forward.1} parent=0 // pred_region
    _
  $region29: #{_wsn_forward.1} parent=0 // pred_fallthru
    _
  // Predicated region
  $region30: #{_wsn_forward.1} parent=0 // pred_check
    _
  $region31: #{_wsn_forward.1} parent=0 // pred_check_branch
    %36 = sbr.rel (0) target = $region33
  $region32: #{_wsn_forward.1} parent=0 // pred_region
    _
  $region33: #{_wsn_forward.1} parent=0 // pred_fallthru
    _
  // Predicated region
  $region34: #{_wsn_forward.1} parent=0 // pred_check
    _
  $region35: #{_wsn_forward.1} parent=0 // pred_check_branch
    %38 = sbr.rel (0) target = $region37
  $region36: #{_wsn_forward.1} parent=0 // pred_region
    _
  $region37: #{_wsn_forward.1} parent=0 // pred_fallthru
    _
  // Predicated region
  $region38: #{_wsn_forward.1} parent=0 // pred_check
    _
  $region39: #{_wsn_forward.1} parent=0 // pred_check_branch
    %40 = sbr.rel (0) target = $region41
  $region40: #{_wsn_forward.1} parent=0 // pred_region
    _
  $region41: #{_wsn_forward.1} parent=0 // pred_fallthru
    _
  // Predicated region
  $region42: #{_wsn_forward.1} parent=0 // pred_check
    _
  $region43: #{_wsn_forward.1} parent=0 // pred_check_branch
    %42 = sbr.rel (0) target = $region45
  $region44: #{_wsn_forward.1} parent=0 // pred_region
    _
  $region45: #{_wsn_forward.1} parent=0 // pred_fallthru
    _
  // Predicated region
  $region46: #{_wsn_forward.1} parent=0 // pred_check
    _
  $region47: #{_wsn_forward.1} parent=0 // pred_check_branch
    %44 = sbr.rel (0) target = $region49
  $region48: #{_wsn_forward.1} parent=0 // pred_region
    _
  $region49: #{_wsn_forward.1} parent=0 // pred_fallthru
    _
  %v45 = vld [vmem:[%s0] sm:$0xff]
  %v46 = vld [vmem:[%s0 + $0x8] sm:$0xff]
  %v47 = vld [vmem:[%s0 + $0x10] sm:$0xff]
  %v48 = vld [vmem:[%s0 + $0x18] sm:$0xff]
  %v49 = vld [vmem:[%s0 + $0x20] sm:$0xff]
  %v50 = vld [vmem:[%s0 + $0x28] sm:$0xff]
  %v51 = vld [vmem:[%s0 + $0x30] sm:$0xff]
  %v52 = vld [vmem:[%s0 + $0x38] sm:$0xff]
  %v53 = vld [vmem:[%s0 + $0x40] sm:$0xff]
  %v54 = vld [vmem:[%s0 + $0x48] sm:$0xff]
  %v55 = vld [vmem:[%s0 + $0x50] sm:$0xff]
  %v56 = vld [vmem:[%s0 + $0x58] sm:$0xff]
  %v57 = vld [vmem:[%s0 + $0x60] sm:$0xf]
  %v58 = vld [vmem:[%s1] sm:$0xff]
  %v59 = vld [vmem:[%s1 + $0x8] sm:$0xff]
  %v60 = vld [vmem:[%s1 + $0x10] sm:$0xff]
  %v61 = vld [vmem:[%s1 + $0x18] sm:$0x1]
  %v62 = vld [vmem:[%s2] sm:$0x1]
  %v64 = vlaneseq
  %v65 = vshrl.u32 %v64, 7
  %v66 = vsub.s32 0, %v65
  %v67 = vrot.slane %v62, %v66
  %vm69 = vcmask 203776
  %v71 = vsel %vm69, %v45, 0
  %v74 = vsel %vm69, %v46, 0
  %v77 = vsel %vm69, %v47, 0
  %v80 = vsel %vm69, %v48, 0
  %v83 = vsel %vm69, %v49, 0
  %v86 = vsel %vm69, %v50, 0
  %v89 = vsel %vm69, %v51, 0
  %v92 = vsel %vm69, %v52, 0
  %v95 = vsel %vm69, %v53, 0
  %v98 = vsel %vm69, %v54, 0
  %v101 = vsel %vm69, %v55, 0
  %v104 = vsel %vm69, %v56, 0
  %v107 = vsel %vm69, %v57, 0
  %vm109 = vcmask 1040384
  %v111 = vsel %vm109, %v61, 0
  %113 = vmatprep.subr.mxu0 0.0
  %114 = vmatpush1.msra.mxu0 %v58
  %115 = vmatprep.subr.mxu0 0.0
  %116 = vmatpush1.msra.mxu0 %v59
  %117 = vmatprep.subr.mxu0 0.0
  %118 = vmatpush1.msra.mxu0 %v60
  %119 = vmatprep.subr.mxu0 0.0
  %120 = vmatpush1.msra.mxu0 %v111
  %121 = vmatprep.subr.mxu0 0.0
  %122 = vmatpush1.msra.mxu0 0.0
  %123 = vmatprep.subr.mxu0 0.0
  %124 = vmatpush1.msra.mxu0 0.0
  %125 = vmatprep.subr.mxu0 0.0
  %126 = vmatpush1.msra.mxu0 0.0
  %127 = vmatprep.subr.mxu0 0.0
  %128 = vmatpush1.msra.mxu0 0.0
  %129 = vmatprep.subr.mxu0 0.0
  %130 = vmatpush1.msra.mxu0 0.0
  %131 = vmatprep.subr.mxu0 0.0
  %132 = vmatpush1.msra.mxu0 0.0
  %133 = vmatprep.subr.mxu0 0.0
  %134 = vmatpush1.msra.mxu0 0.0
  %135 = vmatprep.subr.mxu0 0.0
  %136 = vmatpush1.msra.mxu0 0.0
  %137 = vmatprep.subr.mxu0 0.0
  %138 = vmatpush1.msra.mxu0 0.0
  %139 = vmatprep.subr.mxu0 0.0
  %140 = vmatpush1.msra.mxu0 0.0
  %141 = vmatprep.subr.mxu0 0.0
  %142 = vmatpush1.msra.mxu0 0.0
  %143 = vmatprep.subr.mxu0 0.0
  %144 = vmatpush1.msra.mxu0 0.0
  %145 = vmatprep.subr.mxu0 0.0
  %146 = vmatpush1.msra.mxu0 0.0
  %147 = vmatprep.subr.mxu0 0.0
  %148 = vmatpush1.msra.mxu0 0.0
  %149 = vmatprep.subr.mxu0 0.0
  %150 = vmatpush1.msra.mxu0 0.0
  %151 = vmatprep.subr.mxu0 0.0
  %152 = vmatpush1.msra.mxu0 0.0
  %153 = vmatprep.subr.mxu0 0.0
  %154 = vmatpush1.msra.mxu0 0.0
  %155 = vmatprep.subr.mxu0 0.0
  %156 = vmatpush1.msra.mxu0 0.0
  %157 = vmatprep.subr.mxu0 0.0
  %158 = vmatpush1.msra.mxu0 0.0
  %159 = vmatprep.subr.mxu0 0.0
  %160 = vmatpush1.msra.mxu0 0.0
  %161 = vmatprep.subr.mxu0 0.0
  %162 = vmatpush1.msra.mxu0 0.0
  %163 = vmatprep.subr.mxu0 0.0
  %164 = vmatpush1.msra.mxu0 0.0
  %165 = vmatprep.subr.mxu0 0.0
  %166 = vmatpush1.msra.mxu0 0.0
  %167 = vmatprep.subr.mxu0 0.0
  %168 = vmatpush1.msra.mxu0 0.0
  %169 = vmatprep.subr.mxu0 0.0
  %170 = vmatpush1.msra.mxu0 0.0
  %171 = vmatprep.subr.mxu0 0.0
  %172 = vmatpush1.msra.mxu0 0.0
  %173 = vmatprep.subr.mxu0 0.0
  %174 = vmatpush1.msra.mxu0 0.0
  %175 = vmatprep.subr.mxu0 0.0
  %176 = vmatpush1.msra.mxu0 0.0
  %177 = vmatprep.mubr.f32.mxu0 0.0
  %178 = vmatmul.mubr.f32.gmra.mrb[0].mxu0 %v71
  %v179 = vpop.f32.mrb[0].mxu0
  %v180 = vadd.f32 %v67, %v179
  %v181 = vpop.f32.mrb[0].mxu0
  %182 = vmatprep.mubr.f32.mxu0 0.0
  %183 = vmatmul.mubr.f32.gmra.mrb[0].mxu0 %v74
  %v184 = vpop.f32.mrb[0].mxu0
  %v185 = vadd.f32 %v67, %v184
  %v186 = vpop.f32.mrb[0].mxu0
  %187 = vmatprep.mubr.f32.mxu0 0.0
  %188 = vmatmul.mubr.f32.gmra.mrb[0].mxu0 %v77
  %v189 = vpop.f32.mrb[0].mxu0
  %v190 = vadd.f32 %v67, %v189
  %v191 = vpop.f32.mrb[0].mxu0
  %192 = vmatprep.mubr.f32.mxu0 0.0
  %193 = vmatmul.mubr.f32.gmra.mrb[0].mxu0 %v80
  %v194 = vpop.f32.mrb[0].mxu0
  %v195 = vadd.f32 %v67, %v194
  %v196 = vpop.f32.mrb[0].mxu0
  %197 = vmatprep.mubr.f32.mxu0 0.0
  %198 = vmatmul.mubr.f32.gmra.mrb[0].mxu0 %v83
  %v199 = vpop.f32.mrb[0].mxu0
  %v200 = vadd.f32 %v67, %v199
  %v201 = vpop.f32.mrb[0].mxu0
  %202 = vmatprep.mubr.f32.mxu0 0.0
  %203 = vmatmul.mubr.f32.gmra.mrb[0].mxu0 %v86
  %v204 = vpop.f32.mrb[0].mxu0
  %v205 = vadd.f32 %v67, %v204
  %v206 = vpop.f32.mrb[0].mxu0
  %207 = vmatprep.mubr.f32.mxu0 0.0
  %208 = vmatmul.mubr.f32.gmra.mrb[0].mxu0 %v89
  %v209 = vpop.f32.mrb[0].mxu0
  %v210 = vadd.f32 %v67, %v209
  %v211 = vpop.f32.mrb[0].mxu0
  %212 = vmatprep.mubr.f32.mxu0 0.0
  %213 = vmatmul.mubr.f32.gmra.mrb[0].mxu0 %v92
  %v214 = vpop.f32.mrb[0].mxu0
  %v215 = vadd.f32 %v67, %v214
  %v216 = vpop.f32.mrb[0].mxu0
  %217 = vmatprep.mubr.f32.mxu0 0.0
  %218 = vmatmul.mubr.f32.gmra.mrb[0].mxu0 %v95
  %v219 = vpop.f32.mrb[0].mxu0
  %v220 = vadd.f32 %v67, %v219
  %v221 = vpop.f32.mrb[0].mxu0
  %222 = vmatprep.mubr.f32.mxu0 0.0
  %223 = vmatmul.mubr.f32.gmra.mrb[0].mxu0 %v98
  %v224 = vpop.f32.mrb[0].mxu0
  %v225 = vadd.f32 %v67, %v224
  %v226 = vpop.f32.mrb[0].mxu0
  %227 = vmatprep.mubr.f32.mxu0 0.0
  %228 = vmatmul.mubr.f32.gmra.mrb[0].mxu0 %v101
  %v229 = vpop.f32.mrb[0].mxu0
  %v230 = vadd.f32 %v67, %v229
  %v231 = vpop.f32.mrb[0].mxu0
  %232 = vmatprep.mubr.f32.mxu0 0.0
  %233 = vmatmul.mubr.f32.gmra.mrb[0].mxu0 %v104
  %v234 = vpop.f32.mrb[0].mxu0
  %v235 = vadd.f32 %v67, %v234
  %v236 = vpop.f32.mrb[0].mxu0
  %237 = vmatprep.mubr.f32.mxu0 0.0
  %238 = vmatmul.mubr.f32.gmra.mrb[0].mxu0 %v107
  %v239 = vpop.f32.mrb[0].mxu0
  %v240 = vadd.f32 %v67, %v239
  %v241 = vpop.f32.mrb[0].mxu0
  %242 = vdwg.mxu0
  %v243 = vmax.f32 %v180, 0.0
  %v244 = vmax.f32 %v185, 0.0
  %v245 = vmax.f32 %v190, 0.0
  %v246 = vmax.f32 %v195, 0.0
  %v247 = vmax.f32 %v200, 0.0
  %v248 = vmax.f32 %v205, 0.0
  %v249 = vmax.f32 %v210, 0.0
  %v250 = vmax.f32 %v215, 0.0
  %v251 = vmax.f32 %v220, 0.0
  %v252 = vmax.f32 %v225, 0.0
  %v253 = vmax.f32 %v230, 0.0
  %v254 = vmax.f32 %v235, 0.0
  %v255 = vmax.f32 %v240, 0.0
  %v256 = vld [vmem:[%s0 + $0x64] sm:$0xff]
  %v257 = vld [vmem:[%s0 + $0x6c] sm:$0xff]
  %v258 = vld [vmem:[%s0 + $0x74] sm:$0xff]
  %v259 = vld [vmem:[%s0 + $0x7c] sm:$0xff]
  %v260 = vld [vmem:[%s0 + $0x84] sm:$0xff]
  %v261 = vld [vmem:[%s0 + $0x8c] sm:$0xff]
  %v262 = vld [vmem:[%s0 + $0x94] sm:$0xff]
  %v263 = vld [vmem:[%s0 + $0x9c] sm:$0xff]
  %v264 = vld [vmem:[%s0 + $0xa4] sm:$0xff]
  %v265 = vld [vmem:[%s0 + $0xac] sm:$0xff]
  %v266 = vld [vmem:[%s0 + $0xb4] sm:$0xff]
  %v267 = vld [vmem:[%s0 + $0xbc] sm:$0xff]
  %v268 = vld [vmem:[%s0 + $0xc4] sm:$0xf]
  %v270 = vsel %vm69, %v256, 0
  %v273 = vsel %vm69, %v257, 0
  %v276 = vsel %vm69, %v258, 0
  %v279 = vsel %vm69, %v259, 0
  %v282 = vsel %vm69, %v260, 0
  %v285 = vsel %vm69, %v261, 0
  %v288 = vsel %vm69, %v262, 0
  %v291 = vsel %vm69, %v263, 0
  %v294 = vsel %vm69, %v264, 0
  %v297 = vsel %vm69, %v265, 0
  %v300 = vsel %vm69, %v266, 0
  %v303 = vsel %vm69, %v267, 0
  %v306 = vsel %vm69, %v268, 0
  %308 = vmatprep.subr.mxu0 0.0
  %309 = vmatpush1.msra.mxu0 %v58
  %310 = vmatprep.subr.mxu0 0.0
  %311 = vmatpush1.msra.mxu0 %v59
  %312 = vmatprep.subr.mxu0 0.0
  %313 = vmatpush1.msra.mxu0 %v60
  %314 = vmatprep.subr.mxu0 0.0
  %315 = vmatpush1.msra.mxu0 %v111
  %316 = vmatprep.subr.mxu0 0.0
  %317 = vmatpush1.msra.mxu0 0.0
  %318 = vmatprep.subr.mxu0 0.0
  %319 = vmatpush1.msra.mxu0 0.0
  %320 = vmatprep.subr.mxu0 0.0
  %321 = vmatpush1.msra.mxu0 0.0
  %322 = vmatprep.subr.mxu0 0.0
  %323 = vmatpush1.msra.mxu0 0.0
  %324 = vmatprep.subr.mxu0 0.0
  %325 = vmatpush1.msra.mxu0 0.0
  %326 = vmatprep.subr.mxu0 0.0
  %327 = vmatpush1.msra.mxu0 0.0
  %328 = vmatprep.subr.mxu0 0.0
  %329 = vmatpush1.msra.mxu0 0.0
  %330 = vmatprep.subr.mxu0 0.0
  %331 = vmatpush1.msra.mxu0 0.0
  %332 = vmatprep.subr.mxu0 0.0
  %333 = vmatpush1.msra.mxu0 0.0
  %334 = vmatprep.subr.mxu0 0.0
  %335 = vmatpush1.msra.mxu0 0.0
  %336 = vmatprep.subr.mxu0 0.0
  %337 = vmatpush1.msra.mxu0 0.0
  %338 = vmatprep.subr.mxu0 0.0
  %339 = vmatpush1.msra.mxu0 0.0
  %340 = vmatprep.subr.mxu0 0.0
  %341 = vmatpush1.msra.mxu0 0.0
  %342 = vmatprep.subr.mxu0 0.0
  %343 = vmatpush1.msra.mxu0 0.0
  %344 = vmatprep.subr.mxu0 0.0
  %345 = vmatpush1.msra.mxu0 0.0
  %346 = vmatprep.subr.mxu0 0.0
  %347 = vmatpush1.msra.mxu0 0.0
  %348 = vmatprep.subr.mxu0 0.0
  %349 = vmatpush1.msra.mxu0 0.0
  %350 = vmatprep.subr.mxu0 0.0
  %351 = vmatpush1.msra.mxu0 0.0
  %352 = vmatprep.subr.mxu0 0.0
  %353 = vmatpush1.msra.mxu0 0.0
  %354 = vmatprep.subr.mxu0 0.0
  %355 = vmatpush1.msra.mxu0 0.0
  %356 = vmatprep.subr.mxu0 0.0
  %357 = vmatpush1.msra.mxu0 0.0
  %358 = vmatprep.subr.mxu0 0.0
  %359 = vmatpush1.msra.mxu0 0.0
  %360 = vmatprep.subr.mxu0 0.0
  %361 = vmatpush1.msra.mxu0 0.0
  %362 = vmatprep.subr.mxu0 0.0
  %363 = vmatpush1.msra.mxu0 0.0
  %364 = vmatprep.subr.mxu0 0.0
  %365 = vmatpush1.msra.mxu0 0.0
  %366 = vmatprep.subr.mxu0 0.0
  %367 = vmatpush1.msra.mxu0 0.0
  %368 = vmatprep.subr.mxu0 0.0
  %369 = vmatpush1.msra.mxu0 0.0
  %370 = vmatprep.subr.mxu0 0.0
  %371 = vmatpush1.msra.mxu0 0.0
  %372 = vmatprep.mubr.f32.mxu0 0.0
  %373 = vmatmul.mubr.f32.gmra.mrb[0].mxu0 %v270
  %v374 = vpop.f32.mrb[0].mxu0
  %v375 = vadd.f32 %v67, %v374
  %v376 = vpop.f32.mrb[0].mxu0
  %377 = vmatprep.mubr.f32.mxu0 0.0
  %378 = vmatmul.mubr.f32.gmra.mrb[0].mxu0 %v273
  %v379 = vpop.f32.mrb[0].mxu0
  %v380 = vadd.f32 %v67, %v379
  %v381 = vpop.f32.mrb[0].mxu0
  %382 = vmatprep.mubr.f32.mxu0 0.0
  %383 = vmatmul.mubr.f32.gmra.mrb[0].mxu0 %v276
  %v384 = vpop.f32.mrb[0].mxu0
  %v385 = vadd.f32 %v67, %v384
  %v386 = vpop.f32.mrb[0].mxu0
  %387 = vmatprep.mubr.f32.mxu0 0.0
  %388 = vmatmul.mubr.f32.gmra.mrb[0].mxu0 %v279
  %v389 = vpop.f32.mrb[0].mxu0
  %v390 = vadd.f32 %v67, %v389
  %v391 = vpop.f32.mrb[0].mxu0
  %392 = vmatprep.mubr.f32.mxu0 0.0
  %393 = vmatmul.mubr.f32.gmra.mrb[0].mxu0 %v282
  %v394 = vpop.f32.mrb[0].mxu0
  %v395 = vadd.f32 %v67, %v394
  %v396 = vpop.f32.mrb[0].mxu0
  %397 = vmatprep.mubr.f32.mxu0 0.0
  %398 = vmatmul.mubr.f32.gmra.mrb[0].mxu0 %v285
  %v399 = vpop.f32.mrb[0].mxu0
  %v400 = vadd.f32 %v67, %v399
  %v401 = vpop.f32.mrb[0].mxu0
  %402 = vmatprep.mubr.f32.mxu0 0.0
  %403 = vmatmul.mubr.f32.gmra.mrb[0].mxu0 %v288
  %v404 = vpop.f32.mrb[0].mxu0
  %v405 = vadd.f32 %v67, %v404
  %v406 = vpop.f32.mrb[0].mxu0
  %407 = vmatprep.mubr.f32.mxu0 0.0
  %408 = vmatmul.mubr.f32.gmra.mrb[0].mxu0 %v291
  %v409 = vpop.f32.mrb[0].mxu0
  %v410 = vadd.f32 %v67, %v409
  %v411 = vpop.f32.mrb[0].mxu0
  %412 = vmatprep.mubr.f32.mxu0 0.0
  %413 = vmatmul.mubr.f32.gmra.mrb[0].mxu0 %v294
  %v414 = vpop.f32.mrb[0].mxu0
  %v415 = vadd.f32 %v67, %v414
  %v416 = vpop.f32.mrb[0].mxu0
  %417 = vmatprep.mubr.f32.mxu0 0.0
  %418 = vmatmul.mubr.f32.gmra.mrb[0].mxu0 %v297
  %v419 = vpop.f32.mrb[0].mxu0
  %v420 = vadd.f32 %v67, %v419
  %v421 = vpop.f32.mrb[0].mxu0
  %422 = vmatprep.mubr.f32.mxu0 0.0
  %423 = vmatmul.mubr.f32.gmra.mrb[0].mxu0 %v300
  %v424 = vpop.f32.mrb[0].mxu0
  %v425 = vadd.f32 %v67, %v424
  %v426 = vpop.f32.mrb[0].mxu0
  %427 = vmatprep.mubr.f32.mxu0 0.0
  %428 = vmatmul.mubr.f32.gmra.mrb[0].mxu0 %v303
  %v429 = vpop.f32.mrb[0].mxu0
  %v430 = vadd.f32 %v67, %v429
  %v431 = vpop.f32.mrb[0].mxu0
  %432 = vmatprep.mubr.f32.mxu0 0.0
  %433 = vmatmul.mubr.f32.gmra.mrb[0].mxu0 %v306
  %v434 = vpop.f32.mrb[0].mxu0
  %v435 = vadd.f32 %v67, %v434
  %v436 = vpop.f32.mrb[0].mxu0
  %437 = vdwg.mxu0
  %v438 = vmax.f32 %v375, 0.0
  %v439 = vmax.f32 %v380, 0.0
  %v440 = vmax.f32 %v385, 0.0
  %v441 = vmax.f32 %v390, 0.0
  %v442 = vmax.f32 %v395, 0.0
  %v443 = vmax.f32 %v400, 0.0
  %v444 = vmax.f32 %v405, 0.0
  %v445 = vmax.f32 %v410, 0.0
  %v446 = vmax.f32 %v415, 0.0
  %v447 = vmax.f32 %v420, 0.0
  %v448 = vmax.f32 %v425, 0.0
  %v449 = vmax.f32 %v430, 0.0
  %v450 = vmax.f32 %v435, 0.0
  %v451 = vmax.f32 %v243, %v438
  %v452 = vmax.f32 %v244, %v439
  %v453 = vmax.f32 %v245, %v440
  %v454 = vmax.f32 %v246, %v441
  %v455 = vmax.f32 %v247, %v442
  %v456 = vmax.f32 %v248, %v443
  %v457 = vmax.f32 %v249, %v444
  %v458 = vmax.f32 %v250, %v445
  %v459 = vmax.f32 %v251, %v446
  %v460 = vmax.f32 %v252, %v447
  %v461 = vmax.f32 %v253, %v448
  %v462 = vmax.f32 %v254, %v449
  %v463 = vmax.f32 %v255, %v450
  %v464 = vld [vmem:[%s0 + $0xc8] sm:$0xff]
  %v465 = vld [vmem:[%s0 + $0xd0] sm:$0xff]
  %v466 = vld [vmem:[%s0 + $0xd8] sm:$0xff]
  %v467 = vld [vmem:[%s0 + $0xe0] sm:$0xff]
  %v468 = vld [vmem:[%s0 + $0xe8] sm:$0xff]
  %v469 = vld [vmem:[%s0 + $0xf0] sm:$0xff]
  %v470 = vld [vmem:[%s0 + $0xf8] sm:$0xff]
  %v471 = vld [vmem:[%s0 + $0x100] sm:$0xff]
  %v472 = vld [vmem:[%s0 + $0x108] sm:$0xff]
  %v473 = vld [vmem:[%s0 + $0x110] sm:$0xff]
  %v474 = vld [vmem:[%s0 + $0x118] sm:$0xff]
  %v475 = vld [vmem:[%s0 + $0x120] sm:$0xff]
  %v476 = vld [vmem:[%s0 + $0x128] sm:$0xf]
  %v478 = vsel %vm69, %v464, 0
  %v481 = vsel %vm69, %v465, 0
  %v484 = vsel %vm69, %v466, 0
  %v487 = vsel %vm69, %v467, 0
  %v490 = vsel %vm69, %v468, 0
  %v493 = vsel %vm69, %v469, 0
  %v496 = vsel %vm69, %v470, 0
  %v499 = vsel %vm69, %v471, 0
  %v502 = vsel %vm69, %v472, 0
  %v505 = vsel %vm69, %v473, 0
  %v508 = vsel %vm69, %v474, 0
  %v511 = vsel %vm69, %v475, 0
  %v514 = vsel %vm69, %v476, 0
  %516 = vmatprep.subr.mxu0 0.0
  %517 = vmatpush1.msra.mxu0 %v58
  %518 = vmatprep.subr.mxu0 0.0
  %519 = vmatpush1.msra.mxu0 %v59
  %520 = vmatprep.subr.mxu0 0.0
  %521 = vmatpush1.msra.mxu0 %v60
  %522 = vmatprep.subr.mxu0 0.0
  %523 = vmatpush1.msra.mxu0 %v111
  %524 = vmatprep.subr.mxu0 0.0
  %525 = vmatpush1.msra.mxu0 0.0
  %526 = vmatprep.subr.mxu0 0.0
  %527 = vmatpush1.msra.mxu0 0.0
  %528 = vmatprep.subr.mxu0 0.0
  %529 = vmatpush1.msra.mxu0 0.0
  %530 = vmatprep.subr.mxu0 0.0
  %531 = vmatpush1.msra.mxu0 0.0
  %532 = vmatprep.subr.mxu0 0.0
  %533 = vmatpush1.msra.mxu0 0.0
  %534 = vmatprep.subr.mxu0 0.0
  %535 = vmatpush1.msra.mxu0 0.0
  %536 = vmatprep.subr.mxu0 0.0
  %537 = vmatpush1.msra.mxu0 0.0
  %538 = vmatprep.subr.mxu0 0.0
  %539 = vmatpush1.msra.mxu0 0.0
  %540 = vmatprep.subr.mxu0 0.0
  %541 = vmatpush1.msra.mxu0 0.0
  %542 = vmatprep.subr.mxu0 0.0
  %543 = vmatpush1.msra.mxu0 0.0
  %544 = vmatprep.subr.mxu0 0.0
  %545 = vmatpush1.msra.mxu0 0.0
  %546 = vmatprep.subr.mxu0 0.0
  %547 = vmatpush1.msra.mxu0 0.0
  %548 = vmatprep.subr.mxu0 0.0
  %549 = vmatpush1.msra.mxu0 0.0
  %550 = vmatprep.subr.mxu0 0.0
  %551 = vmatpush1.msra.mxu0 0.0
  %552 = vmatprep.subr.mxu0 0.0
  %553 = vmatpush1.msra.mxu0 0.0
  %554 = vmatprep.subr.mxu0 0.0
  %555 = vmatpush1.msra.mxu0 0.0
  %556 = vmatprep.subr.mxu0 0.0
  %557 = vmatpush1.msra.mxu0 0.0
  %558 = vmatprep.subr.mxu0 0.0
  %559 = vmatpush1.msra.mxu0 0.0
  %560 = vmatprep.subr.mxu0 0.0
  %561 = vmatpush1.msra.mxu0 0.0
  %562 = vmatprep.subr.mxu0 0.0
  %563 = vmatpush1.msra.mxu0 0.0
  %564 = vmatprep.subr.mxu0 0.0
  %565 = vmatpush1.msra.mxu0 0.0
  %566 = vmatprep.subr.mxu0 0.0
  %567 = vmatpush1.msra.mxu0 0.0
  %568 = vmatprep.subr.mxu0 0.0
  %569 = vmatpush1.msra.mxu0 0.0
  %570 = vmatprep.subr.mxu0 0.0
  %571 = vmatpush1.msra.mxu0 0.0
  %572 = vmatprep.subr.mxu0 0.0
  %573 = vmatpush1.msra.mxu0 0.0
  %574 = vmatprep.subr.mxu0 0.0
  %575 = vmatpush1.msra.mxu0 0.0
  %576 = vmatprep.subr.mxu0 0.0
  %577 = vmatpush1.msra.mxu0 0.0
  %578 = vmatprep.subr.mxu0 0.0
  %579 = vmatpush1.msra.mxu0 0.0
  %580 = vmatprep.mubr.f32.mxu0 0.0
  %581 = vmatmul.mubr.f32.gmra.mrb[0].mxu0 %v478
  %v582 = vpop.f32.mrb[0].mxu0
  %v583 = vadd.f32 %v67, %v582
  %v584 = vpop.f32.mrb[0].mxu0
  %585 = vmatprep.mubr.f32.mxu0 0.0
  %586 = vmatmul.mubr.f32.gmra.mrb[0].mxu0 %v481
  %v587 = vpop.f32.mrb[0].mxu0
  %v588 = vadd.f32 %v67, %v587
  %v589 = vpop.f32.mrb[0].mxu0
  %590 = vmatprep.mubr.f32.mxu0 0.0
  %591 = vmatmul.mubr.f32.gmra.mrb[0].mxu0 %v484
  %v592 = vpop.f32.mrb[0].mxu0
  %v593 = vadd.f32 %v67, %v592
  %v594 = vpop.f32.mrb[0].mxu0
  %595 = vmatprep.mubr.f32.mxu0 0.0
  %596 = vmatmul.mubr.f32.gmra.mrb[0].mxu0 %v487
  %v597 = vpop.f32.mrb[0].mxu0
  %v598 = vadd.f32 %v67, %v597
  %v599 = vpop.f32.mrb[0].mxu0
  %600 = vmatprep.mubr.f32.mxu0 0.0
  %601 = vmatmul.mubr.f32.gmra.mrb[0].mxu0 %v490
  %v602 = vpop.f32.mrb[0].mxu0
  %v603 = vadd.f32 %v67, %v602
  %v604 = vpop.f32.mrb[0].mxu0
  %605 = vmatprep.mubr.f32.mxu0 0.0
  %606 = vmatmul.mubr.f32.gmra.mrb[0].mxu0 %v493
  %v607 = vpop.f32.mrb[0].mxu0
  %v608 = vadd.f32 %v67, %v607
  %v609 = vpop.f32.mrb[0].mxu0
  %610 = vmatprep.mubr.f32.mxu0 0.0
  %611 = vmatmul.mubr.f32.gmra.mrb[0].mxu0 %v496
  %v612 = vpop.f32.mrb[0].mxu0
  %v613 = vadd.f32 %v67, %v612
  %v614 = vpop.f32.mrb[0].mxu0
  %615 = vmatprep.mubr.f32.mxu0 0.0
  %616 = vmatmul.mubr.f32.gmra.mrb[0].mxu0 %v499
  %v617 = vpop.f32.mrb[0].mxu0
  %v618 = vadd.f32 %v67, %v617
  %v619 = vpop.f32.mrb[0].mxu0
  %620 = vmatprep.mubr.f32.mxu0 0.0
  %621 = vmatmul.mubr.f32.gmra.mrb[0].mxu0 %v502
  %v622 = vpop.f32.mrb[0].mxu0
  %v623 = vadd.f32 %v67, %v622
  %v624 = vpop.f32.mrb[0].mxu0
  %625 = vmatprep.mubr.f32.mxu0 0.0
  %626 = vmatmul.mubr.f32.gmra.mrb[0].mxu0 %v505
  %v627 = vpop.f32.mrb[0].mxu0
  %v628 = vadd.f32 %v67, %v627
  %v629 = vpop.f32.mrb[0].mxu0
  %630 = vmatprep.mubr.f32.mxu0 0.0
  %631 = vmatmul.mubr.f32.gmra.mrb[0].mxu0 %v508
  %v632 = vpop.f32.mrb[0].mxu0
  %v633 = vadd.f32 %v67, %v632
  %v634 = vpop.f32.mrb[0].mxu0
  %635 = vmatprep.mubr.f32.mxu0 0.0
  %636 = vmatmul.mubr.f32.gmra.mrb[0].mxu0 %v511
  %v637 = vpop.f32.mrb[0].mxu0
  %v638 = vadd.f32 %v67, %v637
  %v639 = vpop.f32.mrb[0].mxu0
  %640 = vmatprep.mubr.f32.mxu0 0.0
  %641 = vmatmul.mubr.f32.gmra.mrb[0].mxu0 %v514
  %v642 = vpop.f32.mrb[0].mxu0
  %v643 = vadd.f32 %v67, %v642
  %v644 = vpop.f32.mrb[0].mxu0
  %645 = vdwg.mxu0
  %v646 = vmax.f32 %v583, 0.0
  %v647 = vmax.f32 %v588, 0.0
  %v648 = vmax.f32 %v593, 0.0
  %v649 = vmax.f32 %v598, 0.0
  %v650 = vmax.f32 %v603, 0.0
  %v651 = vmax.f32 %v608, 0.0
  %v652 = vmax.f32 %v613, 0.0
  %v653 = vmax.f32 %v618, 0.0
  %v654 = vmax.f32 %v623, 0.0
  %v655 = vmax.f32 %v628, 0.0
  %v656 = vmax.f32 %v633, 0.0
  %v657 = vmax.f32 %v638, 0.0
  %v658 = vmax.f32 %v643, 0.0
  %v659 = vmax.f32 %v451, %v646
  %v660 = vmax.f32 %v452, %v647
  %v661 = vmax.f32 %v453, %v648
  %v662 = vmax.f32 %v454, %v649
  %v663 = vmax.f32 %v455, %v650
  %v664 = vmax.f32 %v456, %v651
  %v665 = vmax.f32 %v457, %v652
  %v666 = vmax.f32 %v458, %v653
  %v667 = vmax.f32 %v459, %v654
  %v668 = vmax.f32 %v460, %v655
  %v669 = vmax.f32 %v461, %v656
  %v670 = vmax.f32 %v462, %v657
  %v671 = vmax.f32 %v463, %v658
  %v672 = vld [vmem:[%s0 + $0x12c] sm:$0xff]
  %v673 = vld [vmem:[%s0 + $0x134] sm:$0xff]
  %v674 = vld [vmem:[%s0 + $0x13c] sm:$0xff]
  %v675 = vld [vmem:[%s0 + $0x144] sm:$0xff]
  %v676 = vld [vmem:[%s0 + $0x14c] sm:$0xff]
  %v677 = vld [vmem:[%s0 + $0x154] sm:$0xff]
  %v678 = vld [vmem:[%s0 + $0x15c] sm:$0xff]
  %v679 = vld [vmem:[%s0 + $0x164] sm:$0xff]
  %v680 = vld [vmem:[%s0 + $0x16c] sm:$0xff]
  %v681 = vld [vmem:[%s0 + $0x174] sm:$0xff]
  %v682 = vld [vmem:[%s0 + $0x17c] sm:$0xff]
  %v683 = vld [vmem:[%s0 + $0x184] sm:$0xff]
  %v684 = vld [vmem:[%s0 + $0x18c] sm:$0xf]
  %v686 = vsel %vm69, %v672, 0
  %v689 = vsel %vm69, %v673, 0
  %v692 = vsel %vm69, %v674, 0
  %v695 = vsel %vm69, %v675, 0
  %v698 = vsel %vm69, %v676, 0
  %v701 = vsel %vm69, %v677, 0
  %v704 = vsel %vm69, %v678, 0
  %v707 = vsel %vm69, %v679, 0
  %v710 = vsel %vm69, %v680, 0
  %v713 = vsel %vm69, %v681, 0
  %v716 = vsel %vm69, %v682, 0
  %v719 = vsel %vm69, %v683, 0
  %v722 = vsel %vm69, %v684, 0
  %724 = vmatprep.subr.mxu0 0.0
  %725 = vmatpush1.msra.mxu0 %v58
  %726 = vmatprep.subr.mxu0 0.0
  %727 = vmatpush1.msra.mxu0 %v59
  %728 = vmatprep.subr.mxu0 0.0
  %729 = vmatpush1.msra.mxu0 %v60
  %730 = vmatprep.subr.mxu0 0.0
  %731 = vmatpush1.msra.mxu0 %v111
  %732 = vmatprep.subr.mxu0 0.0
  %733 = vmatpush1.msra.mxu0 0.0
  %734 = vmatprep.subr.mxu0 0.0
  %735 = vmatpush1.msra.mxu0 0.0
  %736 = vmatprep.subr.mxu0 0.0
  %737 = vmatpush1.msra.mxu0 0.0
  %738 = vmatprep.subr.mxu0 0.0
  %739 = vmatpush1.msra.mxu0 0.0
  %740 = vmatprep.subr.mxu0 0.0
  %741 = vmatpush1.msra.mxu0 0.0
  %742 = vmatprep.subr.mxu0 0.0
  %743 = vmatpush1.msra.mxu0 0.0
  %744 = vmatprep.subr.mxu0 0.0
  %745 = vmatpush1.msra.mxu0 0.0
  %746 = vmatprep.subr.mxu0 0.0
  %747 = vmatpush1.msra.mxu0 0.0
  %748 = vmatprep.subr.mxu0 0.0
  %749 = vmatpush1.msra.mxu0 0.0
  %750 = vmatprep.subr.mxu0 0.0
  %751 = vmatpush1.msra.mxu0 0.0
  %752 = vmatprep.subr.mxu0 0.0
  %753 = vmatpush1.msra.mxu0 0.0
  %754 = vmatprep.subr.mxu0 0.0
  %755 = vmatpush1.msra.mxu0 0.0
  %756 = vmatprep.subr.mxu0 0.0
  %757 = vmatpush1.msra.mxu0 0.0
  %758 = vmatprep.subr.mxu0 0.0
  %759 = vmatpush1.msra.mxu0 0.0
  %760 = vmatprep.subr.mxu0 0.0
  %761 = vmatpush1.msra.mxu0 0.0
  %762 = vmatprep.subr.mxu0 0.0
  %763 = vmatpush1.msra.mxu0 0.0
  %764 = vmatprep.subr.mxu0 0.0
  %765 = vmatpush1.msra.mxu0 0.0
  %766 = vmatprep.subr.mxu0 0.0
  %767 = vmatpush1.msra.mxu0 0.0
  %768 = vmatprep.subr.mxu0 0.0
  %769 = vmatpush1.msra.mxu0 0.0
  %770 = vmatprep.subr.mxu0 0.0
  %771 = vmatpush1.msra.mxu0 0.0
  %772 = vmatprep.subr.mxu0 0.0
  %773 = vmatpush1.msra.mxu0 0.0
  %774 = vmatprep.subr.mxu0 0.0
  %775 = vmatpush1.msra.mxu0 0.0
  %776 = vmatprep.subr.mxu0 0.0
  %777 = vmatpush1.msra.mxu0 0.0
  %778 = vmatprep.subr.mxu0 0.0
  %779 = vmatpush1.msra.mxu0 0.0
  %780 = vmatprep.subr.mxu0 0.0
  %781 = vmatpush1.msra.mxu0 0.0
  %782 = vmatprep.subr.mxu0 0.0
  %783 = vmatpush1.msra.mxu0 0.0
  %784 = vmatprep.subr.mxu0 0.0
  %785 = vmatpush1.msra.mxu0 0.0
  %786 = vmatprep.subr.mxu0 0.0
  %787 = vmatpush1.msra.mxu0 0.0
  %788 = vmatprep.mubr.f32.mxu0 0.0
  %789 = vmatmul.mubr.f32.gmra.mrb[0].mxu0 %v686
  %v790 = vpop.f32.mrb[0].mxu0
  %v791 = vadd.f32 %v67, %v790
  %v792 = vpop.f32.mrb[0].mxu0
  %793 = vmatprep.mubr.f32.mxu0 0.0
  %794 = vmatmul.mubr.f32.gmra.mrb[0].mxu0 %v689
  %v795 = vpop.f32.mrb[0].mxu0
  %v796 = vadd.f32 %v67, %v795
  %v797 = vpop.f32.mrb[0].mxu0
  %798 = vmatprep.mubr.f32.mxu0 0.0
  %799 = vmatmul.mubr.f32.gmra.mrb[0].mxu0 %v692
  %v800 = vpop.f32.mrb[0].mxu0
  %v801 = vadd.f32 %v67, %v800
  %v802 = vpop.f32.mrb[0].mxu0
  %803 = vmatprep.mubr.f32.mxu0 0.0
  %804 = vmatmul.mubr.f32.gmra.mrb[0].mxu0 %v695
  %v805 = vpop.f32.mrb[0].mxu0
  %v806 = vadd.f32 %v67, %v805
  %v807 = vpop.f32.mrb[0].mxu0
  %808 = vmatprep.mubr.f32.mxu0 0.0
  %809 = vmatmul.mubr.f32.gmra.mrb[0].mxu0 %v698
  %v810 = vpop.f32.mrb[0].mxu0
  %v811 = vadd.f32 %v67, %v810
  %v812 = vpop.f32.mrb[0].mxu0
  %813 = vmatprep.mubr.f32.mxu0 0.0
  %814 = vmatmul.mubr.f32.gmra.mrb[0].mxu0 %v701
  %v815 = vpop.f32.mrb[0].mxu0
  %v816 = vadd.f32 %v67, %v815
  %v817 = vpop.f32.mrb[0].mxu0
  %818 = vmatprep.mubr.f32.mxu0 0.0
  %819 = vmatmul.mubr.f32.gmra.mrb[0].mxu0 %v704
  %v820 = vpop.f32.mrb[0].mxu0
  %v821 = vadd.f32 %v67, %v820
  %v822 = vpop.f32.mrb[0].mxu0
  %823 = vmatprep.mubr.f32.mxu0 0.0
  %824 = vmatmul.mubr.f32.gmra.mrb[0].mxu0 %v707
  %v825 = vpop.f32.mrb[0].mxu0
  %v826 = vadd.f32 %v67, %v825
  %v827 = vpop.f32.mrb[0].mxu0
  %828 = vmatprep.mubr.f32.mxu0 0.0
  %829 = vmatmul.mubr.f32.gmra.mrb[0].mxu0 %v710
  %v830 = vpop.f32.mrb[0].mxu0
  %v831 = vadd.f32 %v67, %v830
  %v832 = vpop.f32.mrb[0].mxu0
  %833 = vmatprep.mubr.f32.mxu0 0.0
  %834 = vmatmul.mubr.f32.gmra.mrb[0].mxu0 %v713
  %v835 = vpop.f32.mrb[0].mxu0
  %v836 = vadd.f32 %v67, %v835
  %v837 = vpop.f32.mrb[0].mxu0
  %838 = vmatprep.mubr.f32.mxu0 0.0
  %839 = vmatmul.mubr.f32.gmra.mrb[0].mxu0 %v716
  %v840 = vpop.f32.mrb[0].mxu0
  %v841 = vadd.f32 %v67, %v840
  %v842 = vpop.f32.mrb[0].mxu0
  %843 = vmatprep.mubr.f32.mxu0 0.0
  %844 = vmatmul.mubr.f32.gmra.mrb[0].mxu0 %v719
  %v845 = vpop.f32.mrb[0].mxu0
  %v846 = vadd.f32 %v67, %v845
  %v847 = vpop.f32.mrb[0].mxu0
  %848 = vmatprep.mubr.f32.mxu0 0.0
  %849 = vmatmul.mubr.f32.gmra.mrb[0].mxu0 %v722
  %v850 = vpop.f32.mrb[0].mxu0
  %v851 = vadd.f32 %v67, %v850
  %v852 = vpop.f32.mrb[0].mxu0
  %853 = vdwg.mxu0
  %v854 = vmax.f32 %v791, 0.0
  %v855 = vmax.f32 %v796, 0.0
  %v856 = vmax.f32 %v801, 0.0
  %v857 = vmax.f32 %v806, 0.0
  %v858 = vmax.f32 %v811, 0.0
  %v859 = vmax.f32 %v816, 0.0
  %v860 = vmax.f32 %v821, 0.0
  %v861 = vmax.f32 %v826, 0.0
  %v862 = vmax.f32 %v831, 0.0
  %v863 = vmax.f32 %v836, 0.0
  %v864 = vmax.f32 %v841, 0.0
  %v865 = vmax.f32 %v846, 0.0
  %v866 = vmax.f32 %v851, 0.0
  %v867 = vmax.f32 %v659, %v854
  %v868 = vmax.f32 %v660, %v855
  %v869 = vmax.f32 %v661, %v856
  %v870 = vmax.f32 %v662, %v857
  %v871 = vmax.f32 %v663, %v858
  %v872 = vmax.f32 %v664, %v859
  %v873 = vmax.f32 %v665, %v860
  %v874 = vmax.f32 %v666, %v861
  %v875 = vmax.f32 %v667, %v862
  %v876 = vmax.f32 %v668, %v863
  %v877 = vmax.f32 %v669, %v864
  %v878 = vmax.f32 %v670, %v865
  %v879 = vmax.f32 %v671, %v866
  %880 = vst [vmem:[#allocation2] sm:$0xff] %v867
  %881 = vst [vmem:[#allocation2 + $0x8] sm:$0xff] %v868
  %882 = vst [vmem:[#allocation2 + $0x10] sm:$0xff] %v869
  %883 = vst [vmem:[#allocation2 + $0x18] sm:$0xff] %v870
  %884 = vst [vmem:[#allocation2 + $0x20] sm:$0xff] %v871
  %885 = vst [vmem:[#allocation2 + $0x28] sm:$0xff] %v872
  %886 = vst [vmem:[#allocation2 + $0x30] sm:$0xff] %v873
  %887 = vst [vmem:[#allocation2 + $0x38] sm:$0xff] %v874
  %888 = vst [vmem:[#allocation2 + $0x40] sm:$0xff] %v875
  %889 = vst [vmem:[#allocation2 + $0x48] sm:$0xff] %v876
  %890 = vst [vmem:[#allocation2 + $0x50] sm:$0xff] %v877
  %891 = vst [vmem:[#allocation2 + $0x58] sm:$0xff] %v878
  %892 = vst [vmem:[#allocation2 + $0x60] sm:$0xf] %v879
  %v893 = vld [vmem:[#allocation2] sm:$0xff]
  %v894 = vld [vmem:[#allocation2 + $0x8] sm:$0xff]
  %v895 = vld [vmem:[#allocation2 + $0x10] sm:$0xff]
  %v896 = vld [vmem:[#allocation2 + $0x18] sm:$0xff]
  %v897 = vld [vmem:[#allocation2 + $0x20] sm:$0xff]
  %v898 = vld [vmem:[#allocation2 + $0x28] sm:$0xff]
  %v899 = vld [vmem:[#allocation2 + $0x30] sm:$0xff]
  %v900 = vld [vmem:[#allocation2 + $0x38] sm:$0xff]
  %v901 = vld [vmem:[#allocation2 + $0x40] sm:$0xff]
  %v902 = vld [vmem:[#allocation2 + $0x48] sm:$0xf]
  %v903 = vld [vmem:[%s3] sm:$0xff]
  %v904 = vld [vmem:[%s3 + $0x8] sm:$0xff]
  %v905 = vld [vmem:[%s3 + $0x10] sm:$0xff]
  %v906 = vld [vmem:[%s3 + $0x18] sm:$0xff]
  %v907 = vld [vmem:[%s3 + $0x20] sm:$0xff]
  %v908 = vld [vmem:[%s3 + $0x28] sm:$0xff]
  %v909 = vld [vmem:[%s3 + $0x30] sm:$0xff]
  %v910 = vld [vmem:[%s3 + $0x38] sm:$0xff]
  %v911 = vld [vmem:[%s3 + $0x40] sm:$0xff]
  %v912 = vld [vmem:[%s3 + $0x48] sm:$0xff]
  %v913 = vld [vmem:[%s3 + $0x50] sm:$0xff]
  %v914 = vld [vmem:[%s3 + $0x58] sm:$0xff]
  %v915 = vld [vmem:[%s3 + $0x60] sm:$0xff]
  %v916 = vld [vmem:[%s3 + $0x68] sm:$0xff]
  %v917 = vld [vmem:[%s3 + $0x70] sm:$0xff]
  %v918 = vld [vmem:[%s3 + $0x78] sm:$0xff]
  %v919 = vld [vmem:[#allocation2 + $0x4] sm:$0xff]
  %v920 = vld [vmem:[#allocation2 + $0xc] sm:$0xff]
  %v921 = vld [vmem:[#allocation2 + $0x14] sm:$0xff]
  %v922 = vld [vmem:[#allocation2 + $0x1c] sm:$0xff]
  %v923 = vld [vmem:[#allocation2 + $0x24] sm:$0xff]
  %v924 = vld [vmem:[#allocation2 + $0x2c] sm:$0xff]
  %v925 = vld [vmem:[#allocation2 + $0x34] sm:$0xff]
  %v926 = vld [vmem:[#allocation2 + $0x3c] sm:$0xff]
  %v927 = vld [vmem:[#allocation2 + $0x44] sm:$0xff]
  %v928 = vld [vmem:[#allocation2 + $0x4c] sm:$0xf]
  %s929 = scalar_lea.vmem %s3, 128
  %v930 = vld [vmem:[%s929] sm:$0xff]
  %v931 = vld [vmem:[%s929 + $0x8] sm:$0xff]
  %v932 = vld [vmem:[%s929 + $0x10] sm:$0xff]
  %v933 = vld [vmem:[%s929 + $0x18] sm:$0xff]
  %v934 = vld [vmem:[%s929 + $0x20] sm:$0xff]
  %v935 = vld [vmem:[%s929 + $0x28] sm:$0xff]
  %v936 = vld [vmem:[%s929 + $0x30] sm:$0xff]
  %v937 = vld [vmem:[%s929 + $0x38] sm:$0xff]
  %v938 = vld [vmem:[%s929 + $0x40] sm:$0xff]
  %v939 = vld [vmem:[%s929 + $0x48] sm:$0xff]
  %v940 = vld [vmem:[%s929 + $0x50] sm:$0xff]
  %v941 = vld [vmem:[%s929 + $0x58] sm:$0xff]
  %v942 = vld [vmem:[%s929 + $0x60] sm:$0xff]
  %v943 = vld [vmem:[%s929 + $0x68] sm:$0xff]
  %v944 = vld [vmem:[%s929 + $0x70] sm:$0xff]
  %v945 = vld [vmem:[%s929 + $0x78] sm:$0xff]
  %946 = vmatprep.subr.mxu0 0.0
  %947 = vmatpush1.msra.mxu0 %v930
  %948 = vmatprep.subr.mxu0 0.0
  %949 = vmatpush1.msra.mxu0 %v931
  %950 = vmatprep.subr.mxu0 0.0
  %951 = vmatpush1.msra.mxu0 %v932
  %952 = vmatprep.subr.mxu0 0.0
  %953 = vmatpush1.msra.mxu0 %v933
  %954 = vmatprep.subr.mxu0 0.0
  %955 = vmatpush1.msra.mxu0 %v934
  %956 = vmatprep.subr.mxu0 0.0
  %957 = vmatpush1.msra.mxu0 %v935
  %958 = vmatprep.subr.mxu0 0.0
  %959 = vmatpush1.msra.mxu0 %v936
  %960 = vmatprep.subr.mxu0 0.0
  %961 = vmatpush1.msra.mxu0 %v937
  %962 = vmatprep.subr.mxu0 0.0
  %963 = vmatpush1.msra.mxu0 %v938
  %964 = vmatprep.subr.mxu0 0.0
  %965 = vmatpush1.msra.mxu0 %v939
  %966 = vmatprep.subr.mxu0 0.0
  %967 = vmatpush1.msra.mxu0 %v940
  %968 = vmatprep.subr.mxu0 0.0
  %969 = vmatpush1.msra.mxu0 %v941
  %970 = vmatprep.subr.mxu0 0.0
  %971 = vmatpush1.msra.mxu0 %v942
  %972 = vmatprep.subr.mxu0 0.0
  %973 = vmatpush1.msra.mxu0 %v943
  %974 = vmatprep.subr.mxu0 0.0
  %975 = vmatpush1.msra.mxu0 %v944
  %976 = vmatprep.subr.mxu0 0.0
  %977 = vmatpush1.msra.mxu0 %v945
  %978 = vmatprep.subr.mxu0 0.0
  %979 = vmatpush1.msra.mxu0 0.0
  %980 = vmatprep.subr.mxu0 0.0
  %981 = vmatpush1.msra.mxu0 0.0
  %982 = vmatprep.subr.mxu0 0.0
  %983 = vmatpush1.msra.mxu0 0.0
  %984 = vmatprep.subr.mxu0 0.0
  %985 = vmatpush1.msra.mxu0 0.0
  %986 = vmatprep.subr.mxu0 0.0
  %987 = vmatpush1.msra.mxu0 0.0
  %988 = vmatprep.subr.mxu0 0.0
  %989 = vmatpush1.msra.mxu0 0.0
  %990 = vmatprep.subr.mxu0 0.0
  %991 = vmatpush1.msra.mxu0 0.0
  %992 = vmatprep.subr.mxu0 0.0
  %993 = vmatpush1.msra.mxu0 0.0
  %994 = vmatprep.subr.mxu0 0.0
  %995 = vmatpush1.msra.mxu0 0.0
  %996 = vmatprep.subr.mxu0 0.0
  %997 = vmatpush1.msra.mxu0 0.0
  %998 = vmatprep.subr.mxu0 0.0
  %999 = vmatpush1.msra.mxu0 0.0
  %1000 = vmatprep.subr.mxu0 0.0
  %1001 = vmatpush1.msra.mxu0 0.0
  %1002 = vmatprep.subr.mxu0 0.0
  %1003 = vmatpush1.msra.mxu0 0.0
  %1004 = vmatprep.subr.mxu0 0.0
  %1005 = vmatpush1.msra.mxu0 0.0
  %1006 = vmatprep.subr.mxu0 0.0
  %1007 = vmatpush1.msra.mxu0 0.0
  %1008 = vmatprep.subr.mxu0 0.0
  %1009 = vmatpush1.msra.mxu0 0.0
  %1010 = vmatprep.mubr.f32.mxu0 0.0
  %1011 = vmatmul.mubr.f32.gmra.mrb[0].mxu0 %v919
  %v1012 = vpop.f32.mrb[0].mxu0
  %v1013 = vadd.f32 0.0, %v1012
  %v1014 = vpop.f32.mrb[0].mxu0
  %1015 = vmatprep.mubr.f32.mxu0 0.0
  %1016 = vmatmul.mubr.f32.gmra.mrb[0].mxu0 %v920
  %v1017 = vpop.f32.mrb[0].mxu0
  %v1018 = vadd.f32 0.0, %v1017
  %v1019 = vpop.f32.mrb[0].mxu0
  %1020 = vmatprep.mubr.f32.mxu0 0.0
  %1021 = vmatmul.mubr.f32.gmra.mrb[0].mxu0 %v921
  %v1022 = vpop.f32.mrb[0].mxu0
  %v1023 = vadd.f32 0.0, %v1022
  %v1024 = vpop.f32.mrb[0].mxu0
  %1025 = vmatprep.mubr.f32.mxu0 0.0
  %1026 = vmatmul.mubr.f32.gmra.mrb[0].mxu0 %v922
  %v1027 = vpop.f32.mrb[0].mxu0
  %v1028 = vadd.f32 0.0, %v1027
  %v1029 = vpop.f32.mrb[0].mxu0
  %1030 = vmatprep.mubr.f32.mxu0 0.0
  %1031 = vmatmul.mubr.f32.gmra.mrb[0].mxu0 %v923
  %v1032 = vpop.f32.mrb[0].mxu0
  %v1033 = vadd.f32 0.0, %v1032
  %v1034 = vpop.f32.mrb[0].mxu0
  %1035 = vmatprep.mubr.f32.mxu0 0.0
  %1036 = vmatmul.mubr.f32.gmra.mrb[0].mxu0 %v924
  %v1037 = vpop.f32.mrb[0].mxu0
  %v1038 = vadd.f32 0.0, %v1037
  %v1039 = vpop.f32.mrb[0].mxu0
  %1040 = vmatprep.mubr.f32.mxu0 0.0
  %1041 = vmatmul.mubr.f32.gmra.mrb[0].mxu0 %v925
  %v1042 = vpop.f32.mrb[0].mxu0
  %v1043 = vadd.f32 0.0, %v1042
  %v1044 = vpop.f32.mrb[0].mxu0
  %1045 = vmatprep.mubr.f32.mxu0 0.0
  %1046 = vmatmul.mubr.f32.gmra.mrb[0].mxu0 %v926
  %v1047 = vpop.f32.mrb[0].mxu0
  %v1048 = vadd.f32 0.0, %v1047
  %v1049 = vpop.f32.mrb[0].mxu0
  %1050 = vmatprep.mubr.f32.mxu0 0.0
  %1051 = vmatmul.mubr.f32.gmra.mrb[0].mxu0 %v927
  %v1052 = vpop.f32.mrb[0].mxu0
  %v1053 = vadd.f32 0.0, %v1052
  %v1054 = vpop.f32.mrb[0].mxu0
  %1055 = vmatprep.mubr.f32.mxu0 0.0
  %1056 = vmatmul.mubr.f32.gmra.mrb[0].mxu0 %v928
  %v1057 = vpop.f32.mrb[0].mxu0
  %v1058 = vadd.f32 0.0, %v1057
  %v1059 = vpop.f32.mrb[0].mxu0
  %1060 = vdwg.mxu0
  %1061 = vmatprep.subr.mxu0 0.0
  %1062 = vmatpush1.msra.mxu0 %v903
  %1063 = vmatprep.subr.mxu0 0.0
  %1064 = vmatpush1.msra.mxu0 %v904
  %1065 = vmatprep.subr.mxu0 0.0
  %1066 = vmatpush1.msra.mxu0 %v905
  %1067 = vmatprep.subr.mxu0 0.0
  %1068 = vmatpush1.msra.mxu0 %v906
  %1069 = vmatprep.subr.mxu0 0.0
  %1070 = vmatpush1.msra.mxu0 %v907
  %1071 = vmatprep.subr.mxu0 0.0
  %1072 = vmatpush1.msra.mxu0 %v908
  %1073 = vmatprep.subr.mxu0 0.0
  %1074 = vmatpush1.msra.mxu0 %v909
  %1075 = vmatprep.subr.mxu0 0.0
  %1076 = vmatpush1.msra.mxu0 %v910
  %1077 = vmatprep.subr.mxu0 0.0
  %1078 = vmatpush1.msra.mxu0 %v911
  %1079 = vmatprep.subr.mxu0 0.0
  %1080 = vmatpush1.msra.mxu0 %v912
  %1081 = vmatprep.subr.mxu0 0.0
  %1082 = vmatpush1.msra.mxu0 %v913
  %1083 = vmatprep.subr.mxu0 0.0
  %1084 = vmatpush1.msra.mxu0 %v914
  %1085 = vmatprep.subr.mxu0 0.0
  %1086 = vmatpush1.msra.mxu0 %v915
  %1087 = vmatprep.subr.mxu0 0.0
  %1088 = vmatpush1.msra.mxu0 %v916
  %1089 = vmatprep.subr.mxu0 0.0
  %1090 = vmatpush1.msra.mxu0 %v917
  %1091 = vmatprep.subr.mxu0 0.0
  %1092 = vmatpush1.msra.mxu0 %v918
  %1093 = vmatprep.subr.mxu0 0.0
  %1094 = vmatpush1.msra.mxu0 0.0
  %1095 = vmatprep.subr.mxu0 0.0
  %1096 = vmatpush1.msra.mxu0 0.0
  %1097 = vmatprep.subr.mxu0 0.0
  %1098 = vmatpush1.msra.mxu0 0.0
  %1099 = vmatprep.subr.mxu0 0.0
  %1100 = vmatpush1.msra.mxu0 0.0
  %1101 = vmatprep.subr.mxu0 0.0
  %1102 = vmatpush1.msra.mxu0 0.0
  %1103 = vmatprep.subr.mxu0 0.0
  %1104 = vmatpush1.msra.mxu0 0.0
  %1105 = vmatprep.subr.mxu0 0.0
  %1106 = vmatpush1.msra.mxu0 0.0
  %1107 = vmatprep.subr.mxu0 0.0
  %1108 = vmatpush1.msra.mxu0 0.0
  %1109 = vmatprep.subr.mxu0 0.0
  %1110 = vmatpush1.msra.mxu0 0.0
  %1111 = vmatprep.subr.mxu0 0.0
  %1112 = vmatpush1.msra.mxu0 0.0
  %1113 = vmatprep.subr.mxu0 0.0
  %1114 = vmatpush1.msra.mxu0 0.0
  %1115 = vmatprep.subr.mxu0 0.0
  %1116 = vmatpush1.msra.mxu0 0.0
  %1117 = vmatprep.subr.mxu0 0.0
  %1118 = vmatpush1.msra.mxu0 0.0
  %1119 = vmatprep.subr.mxu0 0.0
  %1120 = vmatpush1.msra.mxu0 0.0
  %1121 = vmatprep.subr.mxu0 0.0
  %1122 = vmatpush1.msra.mxu0 0.0
  %1123 = vmatprep.subr.mxu0 0.0
  %1124 = vmatpush1.msra.mxu0 0.0
  %1125 = vmatprep.mubr.f32.mxu0 0.0
  %1126 = vmatmul.mubr.f32.gmra.mrb[0].mxu0 %v893
  %v1127 = vpop.f32.mrb[0].mxu0
  %v1128 = vadd.f32 %v1013, %v1127
  %v1129 = vpop.f32.mrb[0].mxu0
  %1130 = vmatprep.mubr.f32.mxu0 0.0
  %1131 = vmatmul.mubr.f32.gmra.mrb[0].mxu0 %v894
  %v1132 = vpop.f32.mrb[0].mxu0
  %v1133 = vadd.f32 %v1018, %v1132
  %v1134 = vpop.f32.mrb[0].mxu0
  %1135 = vmatprep.mubr.f32.mxu0 0.0
  %1136 = vmatmul.mubr.f32.gmra.mrb[0].mxu0 %v895
  %v1137 = vpop.f32.mrb[0].mxu0
  %v1138 = vadd.f32 %v1023, %v1137
  %v1139 = vpop.f32.mrb[0].mxu0
  %1140 = vmatprep.mubr.f32.mxu0 0.0
  %1141 = vmatmul.mubr.f32.gmra.mrb[0].mxu0 %v896
  %v1142 = vpop.f32.mrb[0].mxu0
  %v1143 = vadd.f32 %v1028, %v1142
  %v1144 = vpop.f32.mrb[0].mxu0
  %1145 = vmatprep.mubr.f32.mxu0 0.0
  %1146 = vmatmul.mubr.f32.gmra.mrb[0].mxu0 %v897
  %v1147 = vpop.f32.mrb[0].mxu0
  %v1148 = vadd.f32 %v1033, %v1147
  %v1149 = vpop.f32.mrb[0].mxu0
  %1150 = vmatprep.mubr.f32.mxu0 0.0
  %1151 = vmatmul.mubr.f32.gmra.mrb[0].mxu0 %v898
  %v1152 = vpop.f32.mrb[0].mxu0
  %v1153 = vadd.f32 %v1038, %v1152
  %v1154 = vpop.f32.mrb[0].mxu0
  %1155 = vmatprep.mubr.f32.mxu0 0.0
  %1156 = vmatmul.mubr.f32.gmra.mrb[0].mxu0 %v899
  %v1157 = vpop.f32.mrb[0].mxu0
  %v1158 = vadd.f32 %v1043, %v1157
  %v1159 = vpop.f32.mrb[0].mxu0
  %1160 = vmatprep.mubr.f32.mxu0 0.0
  %1161 = vmatmul.mubr.f32.gmra.mrb[0].mxu0 %v900
  %v1162 = vpop.f32.mrb[0].mxu0
  %v1163 = vadd.f32 %v1048, %v1162
  %v1164 = vpop.f32.mrb[0].mxu0
  %1165 = vmatprep.mubr.f32.mxu0 0.0
  %1166 = vmatmul.mubr.f32.gmra.mrb[0].mxu0 %v901
  %v1167 = vpop.f32.mrb[0].mxu0
  %v1168 = vadd.f32 %v1053, %v1167
  %v1169 = vpop.f32.mrb[0].mxu0
  %1170 = vmatprep.mubr.f32.mxu0 0.0
  %1171 = vmatmul.mubr.f32.gmra.mrb[0].mxu0 %v902
  %v1172 = vpop.f32.mrb[0].mxu0
  %v1173 = vadd.f32 %v1058, %v1172
  %v1174 = vpop.f32.mrb[0].mxu0
  %1175 = vdwg.mxu0
  %v1176 = vld [vmem:[#allocation2 + $0x14] sm:$0xff]
  %v1177 = vld [vmem:[#allocation2 + $0x1c] sm:$0xff]
  %v1178 = vld [vmem:[#allocation2 + $0x24] sm:$0xff]
  %v1179 = vld [vmem:[#allocation2 + $0x2c] sm:$0xff]
  %v1180 = vld [vmem:[#allocation2 + $0x34] sm:$0xff]
  %v1181 = vld [vmem:[#allocation2 + $0x3c] sm:$0xff]
  %v1182 = vld [vmem:[#allocation2 + $0x44] sm:$0xff]
  %v1183 = vld [vmem:[#allocation2 + $0x4c] sm:$0xff]
  %v1184 = vld [vmem:[#allocation2 + $0x54] sm:$0xff]
  %v1185 = vld [vmem:[#allocation2 + $0x5c] sm:$0xf]
  %s1186 = scalar_lea.vmem %s3, 256
  %v1187 = vld [vmem:[%s1186] sm:$0xff]
  %v1188 = vld [vmem:[%s1186 + $0x8] sm:$0xff]
  %v1189 = vld [vmem:[%s1186 + $0x10] sm:$0xff]
  %v1190 = vld [vmem:[%s1186 + $0x18] sm:$0xff]
  %v1191 = vld [vmem:[%s1186 + $0x20] sm:$0xff]
  %v1192 = vld [vmem:[%s1186 + $0x28] sm:$0xff]
  %v1193 = vld [vmem:[%s1186 + $0x30] sm:$0xff]
  %v1194 = vld [vmem:[%s1186 + $0x38] sm:$0xff]
  %v1195 = vld [vmem:[%s1186 + $0x40] sm:$0xff]
  %v1196 = vld [vmem:[%s1186 + $0x48] sm:$0xff]
  %v1197 = vld [vmem:[%s1186 + $0x50] sm:$0xff]
  %v1198 = vld [vmem:[%s1186 + $0x58] sm:$0xff]
  %v1199 = vld [vmem:[%s1186 + $0x60] sm:$0xff]
  %v1200 = vld [vmem:[%s1186 + $0x68] sm:$0xff]
  %v1201 = vld [vmem:[%s1186 + $0x70] sm:$0xff]
  %v1202 = vld [vmem:[%s1186 + $0x78] sm:$0xff]
  %1203 = vmatprep.subr.mxu0 0.0
  %1204 = vmatpush1.msra.mxu0 %v1187
  %1205 = vmatprep.subr.mxu0 0.0
  %1206 = vmatpush1.msra.mxu0 %v1188
  %1207 = vmatprep.subr.mxu0 0.0
  %1208 = vmatpush1.msra.mxu0 %v1189
  %1209 = vmatprep.subr.mxu0 0.0
  %1210 = vmatpush1.msra.mxu0 %v1190
  %1211 = vmatprep.subr.mxu0 0.0
  %1212 = vmatpush1.msra.mxu0 %v1191
  %1213 = vmatprep.subr.mxu0 0.0
  %1214 = vmatpush1.msra.mxu0 %v1192
  %1215 = vmatprep.subr.mxu0 0.0
  %1216 = vmatpush1.msra.mxu0 %v1193
  %1217 = vmatprep.subr.mxu0 0.0
  %1218 = vmatpush1.msra.mxu0 %v1194
  %1219 = vmatprep.subr.mxu0 0.0
  %1220 = vmatpush1.msra.mxu0 %v1195
  %1221 = vmatprep.subr.mxu0 0.0
  %1222 = vmatpush1.msra.mxu0 %v1196
  %1223 = vmatprep.subr.mxu0 0.0
  %1224 = vmatpush1.msra.mxu0 %v1197
  %1225 = vmatprep.subr.mxu0 0.0
  %1226 = vmatpush1.msra.mxu0 %v1198
  %1227 = vmatprep.subr.mxu0 0.0
  %1228 = vmatpush1.msra.mxu0 %v1199
  %1229 = vmatprep.subr.mxu0 0.0
  %1230 = vmatpush1.msra.mxu0 %v1200
  %1231 = vmatprep.subr.mxu0 0.0
  %1232 = vmatpush1.msra.mxu0 %v1201
  %1233 = vmatprep.subr.mxu0 0.0
  %1234 = vmatpush1.msra.mxu0 %v1202
  %1235 = vmatprep.subr.mxu0 0.0
  %1236 = vmatpush1.msra.mxu0 0.0
  %1237 = vmatprep.subr.mxu0 0.0
  %1238 = vmatpush1.msra.mxu0 0.0
  %1239 = vmatprep.subr.mxu0 0.0
  %1240 = vmatpush1.msra.mxu0 0.0
  %1241 = vmatprep.subr.mxu0 0.0
  %1242 = vmatpush1.msra.mxu0 0.0
  %1243 = vmatprep.subr.mxu0 0.0
  %1244 = vmatpush1.msra.mxu0 0.0
  %1245 = vmatprep.subr.mxu0 0.0
  %1246 = vmatpush1.msra.mxu0 0.0
  %1247 = vmatprep.subr.mxu0 0.0
  %1248 = vmatpush1.msra.mxu0 0.0
  %1249 = vmatprep.subr.mxu0 0.0
  %1250 = vmatpush1.msra.mxu0 0.0
  %1251 = vmatprep.subr.mxu0 0.0
  %1252 = vmatpush1.msra.mxu0 0.0
  %1253 = vmatprep.subr.mxu0 0.0
  %1254 = vmatpush1.msra.mxu0 0.0
  %1255 = vmatprep.subr.mxu0 0.0
  %1256 = vmatpush1.msra.mxu0 0.0
  %1257 = vmatprep.subr.mxu0 0.0
  %1258 = vmatpush1.msra.mxu0 0.0
  %1259 = vmatprep.subr.mxu0 0.0
  %1260 = vmatpush1.msra.mxu0 0.0
  %1261 = vmatprep.subr.mxu0 0.0
  %1262 = vmatpush1.msra.mxu0 0.0
  %1263 = vmatprep.subr.mxu0 0.0
  %1264 = vmatpush1.msra.mxu0 0.0
  %1265 = vmatprep.subr.mxu0 0.0
  %1266 = vmatpush1.msra.mxu0 0.0
  %1267 = vmatprep.mubr.f32.mxu0 0.0
  %1268 = vmatmul.mubr.f32.gmra.mrb[0].mxu0 %v1176
  %v1269 = vpop.f32.mrb[0].mxu0
  %v1270 = vadd.f32 0.0, %v1269
  %v1271 = vpop.f32.mrb[0].mxu0
  %1272 = vmatprep.mubr.f32.mxu0 0.0
  %1273 = vmatmul.mubr.f32.gmra.mrb[0].mxu0 %v1177
  %v1274 = vpop.f32.mrb[0].mxu0
  %v1275 = vadd.f32 0.0, %v1274
  %v1276 = vpop.f32.mrb[0].mxu0
  %1277 = vmatprep.mubr.f32.mxu0 0.0
  %1278 = vmatmul.mubr.f32.gmra.mrb[0].mxu0 %v1178
  %v1279 = vpop.f32.mrb[0].mxu0
  %v1280 = vadd.f32 0.0, %v1279
  %v1281 = vpop.f32.mrb[0].mxu0
  %1282 = vmatprep.mubr.f32.mxu0 0.0
  %1283 = vmatmul.mubr.f32.gmra.mrb[0].mxu0 %v1179
  %v1284 = vpop.f32.mrb[0].mxu0
  %v1285 = vadd.f32 0.0, %v1284
  %v1286 = vpop.f32.mrb[0].mxu0
  %1287 = vmatprep.mubr.f32.mxu0 0.0
  %1288 = vmatmul.mubr.f32.gmra.mrb[0].mxu0 %v1180
  %v1289 = vpop.f32.mrb[0].mxu0
  %v1290 = vadd.f32 0.0, %v1289
  %v1291 = vpop.f32.mrb[0].mxu0
  %1292 = vmatprep.mubr.f32.mxu0 0.0
  %1293 = vmatmul.mubr.f32.gmra.mrb[0].mxu0 %v1181
  %v1294 = vpop.f32.mrb[0].mxu0
  %v1295 = vadd.f32 0.0, %v1294
  %v1296 = vpop.f32.mrb[0].mxu0
  %1297 = vmatprep.mubr.f32.mxu0 0.0
  %1298 = vmatmul.mubr.f32.gmra.mrb[0].mxu0 %v1182
  %v1299 = vpop.f32.mrb[0].mxu0
  %v1300 = vadd.f32 0.0, %v1299
  %v1301 = vpop.f32.mrb[0].mxu0
  %1302 = vmatprep.mubr.f32.mxu0 0.0
  %1303 = vmatmul.mubr.f32.gmra.mrb[0].mxu0 %v1183
  %v1304 = vpop.f32.mrb[0].mxu0
  %v1305 = vadd.f32 0.0, %v1304
  %v1306 = vpop.f32.mrb[0].mxu0
  %1307 = vmatprep.mubr.f32.mxu0 0.0
  %1308 = vmatmul.mubr.f32.gmra.mrb[0].mxu0 %v1184
  %v1309 = vpop.f32.mrb[0].mxu0
  %v1310 = vadd.f32 0.0, %v1309
  %v1311 = vpop.f32.mrb[0].mxu0
  %1312 = vmatprep.mubr.f32.mxu0 0.0
  %1313 = vmatmul.mubr.f32.gmra.mrb[0].mxu0 %v1185
  %v1314 = vpop.f32.mrb[0].mxu0
  %v1315 = vadd.f32 0.0, %v1314
  %v1316 = vpop.f32.mrb[0].mxu0
  %1317 = vdwg.mxu0
  %v1318 = vadd.f32 %v1128, %v1270
  %v1319 = vadd.f32 %v1133, %v1275
  %v1320 = vadd.f32 %v1138, %v1280
  %v1321 = vadd.f32 %v1143, %v1285
  %v1322 = vadd.f32 %v1148, %v1290
  %v1323 = vadd.f32 %v1153, %v1295
  %v1324 = vadd.f32 %v1158, %v1300
  %v1325 = vadd.f32 %v1163, %v1305
  %v1326 = vadd.f32 %v1168, %v1310
  %v1327 = vadd.f32 %v1173, %v1315
  %v1328 = vld [vmem:[#allocation2 + $0x18] sm:$0xff]
  %v1329 = vld [vmem:[#allocation2 + $0x20] sm:$0xff]
  %v1330 = vld [vmem:[#allocation2 + $0x28] sm:$0xff]
  %v1331 = vld [vmem:[#allocation2 + $0x30] sm:$0xff]
  %v1332 = vld [vmem:[#allocation2 + $0x38] sm:$0xff]
  %v1333 = vld [vmem:[#allocation2 + $0x40] sm:$0xff]
  %v1334 = vld [vmem:[#allocation2 + $0x48] sm:$0xff]
  %v1335 = vld [vmem:[#allocation2 + $0x50] sm:$0xff]
  %v1336 = vld [vmem:[#allocation2 + $0x58] sm:$0xff]
  %v1337 = vld [vmem:[#allocation2 + $0x60] sm:$0xf]
  %s1338 = scalar_lea.vmem %s3, 384
  %v1339 = vld [vmem:[%s1338] sm:$0xff]
  %v1340 = vld [vmem:[%s1338 + $0x8] sm:$0xff]
  %v1341 = vld [vmem:[%s1338 + $0x10] sm:$0xff]
  %v1342 = vld [vmem:[%s1338 + $0x18] sm:$0xff]
  %v1343 = vld [vmem:[%s1338 + $0x20] sm:$0xff]
  %v1344 = vld [vmem:[%s1338 + $0x28] sm:$0xff]
  %v1345 = vld [vmem:[%s1338 + $0x30] sm:$0xff]
  %v1346 = vld [vmem:[%s1338 + $0x38] sm:$0xff]
  %v1347 = vld [vmem:[%s1338 + $0x40] sm:$0xff]
  %v1348 = vld [vmem:[%s1338 + $0x48] sm:$0xff]
  %v1349 = vld [vmem:[%s1338 + $0x50] sm:$0xff]
  %v1350 = vld [vmem:[%s1338 + $0x58] sm:$0xff]
  %v1351 = vld [vmem:[%s1338 + $0x60] sm:$0xff]
  %v1352 = vld [vmem:[%s1338 + $0x68] sm:$0xff]
  %v1353 = vld [vmem:[%s1338 + $0x70] sm:$0xff]
  %v1354 = vld [vmem:[%s1338 + $0x78] sm:$0xff]
  %1355 = vmatprep.subr.mxu0 0.0
  %1356 = vmatpush1.msra.mxu0 %v1339
  %1357 = vmatprep.subr.mxu0 0.0
  %1358 = vmatpush1.msra.mxu0 %v1340
  %1359 = vmatprep.subr.mxu0 0.0
  %1360 = vmatpush1.msra.mxu0 %v1341
  %1361 = vmatprep.subr.mxu0 0.0
  %1362 = vmatpush1.msra.mxu0 %v1342
  %1363 = vmatprep.subr.mxu0 0.0
  %1364 = vmatpush1.msra.mxu0 %v1343
  %1365 = vmatprep.subr.mxu0 0.0
  %1366 = vmatpush1.msra.mxu0 %v1344
  %1367 = vmatprep.subr.mxu0 0.0
  %1368 = vmatpush1.msra.mxu0 %v1345
  %1369 = vmatprep.subr.mxu0 0.0
  %1370 = vmatpush1.msra.mxu0 %v1346
  %1371 = vmatprep.subr.mxu0 0.0
  %1372 = vmatpush1.msra.mxu0 %v1347
  %1373 = vmatprep.subr.mxu0 0.0
  %1374 = vmatpush1.msra.mxu0 %v1348
  %1375 = vmatprep.subr.mxu0 0.0
  %1376 = vmatpush1.msra.mxu0 %v1349
  %1377 = vmatprep.subr.mxu0 0.0
  %1378 = vmatpush1.msra.mxu0 %v1350
  %1379 = vmatprep.subr.mxu0 0.0
  %1380 = vmatpush1.msra.mxu0 %v1351
  %1381 = vmatprep.subr.mxu0 0.0
  %1382 = vmatpush1.msra.mxu0 %v1352
  %1383 = vmatprep.subr.mxu0 0.0
  %1384 = vmatpush1.msra.mxu0 %v1353
  %1385 = vmatprep.subr.mxu0 0.0
  %1386 = vmatpush1.msra.mxu0 %v1354
  %1387 = vmatprep.subr.mxu0 0.0
  %1388 = vmatpush1.msra.mxu0 0.0
  %1389 = vmatprep.subr.mxu0 0.0
  %1390 = vmatpush1.msra.mxu0 0.0
  %1391 = vmatprep.subr.mxu0 0.0
  %1392 = vmatpush1.msra.mxu0 0.0
  %1393 = vmatprep.subr.mxu0 0.0
  %1394 = vmatpush1.msra.mxu0 0.0
  %1395 = vmatprep.subr.mxu0 0.0
  %1396 = vmatpush1.msra.mxu0 0.0
  %1397 = vmatprep.subr.mxu0 0.0
  %1398 = vmatpush1.msra.mxu0 0.0
  %1399 = vmatprep.subr.mxu0 0.0
  %1400 = vmatpush1.msra.mxu0 0.0
  %1401 = vmatprep.subr.mxu0 0.0
  %1402 = vmatpush1.msra.mxu0 0.0
  %1403 = vmatprep.subr.mxu0 0.0
  %1404 = vmatpush1.msra.mxu0 0.0
  %1405 = vmatprep.subr.mxu0 0.0
  %1406 = vmatpush1.msra.mxu0 0.0
  %1407 = vmatprep.subr.mxu0 0.0
  %1408 = vmatpush1.msra.mxu0 0.0
  %1409 = vmatprep.subr.mxu0 0.0
  %1410 = vmatpush1.msra.mxu0 0.0
  %1411 = vmatprep.subr.mxu0 0.0
  %1412 = vmatpush1.msra.mxu0 0.0
  %1413 = vmatprep.subr.mxu0 0.0
  %1414 = vmatpush1.msra.mxu0 0.0
  %1415 = vmatprep.subr.mxu0 0.0
  %1416 = vmatpush1.msra.mxu0 0.0
  %1417 = vmatprep.subr.mxu0 0.0
  %1418 = vmatpush1.msra.mxu0 0.0
  %1419 = vmatprep.mubr.f32.mxu0 0.0
  %1420 = vmatmul.mubr.f32.gmra.mrb[0].mxu0 %v1328
  %v1421 = vpop.f32.mrb[0].mxu0
  %v1422 = vadd.f32 0.0, %v1421
  %v1423 = vpop.f32.mrb[0].mxu0
  %1424 = vmatprep.mubr.f32.mxu0 0.0
  %1425 = vmatmul.mubr.f32.gmra.mrb[0].mxu0 %v1329
  %v1426 = vpop.f32.mrb[0].mxu0
  %v1427 = vadd.f32 0.0, %v1426
  %v1428 = vpop.f32.mrb[0].mxu0
  %1429 = vmatprep.mubr.f32.mxu0 0.0
  %1430 = vmatmul.mubr.f32.gmra.mrb[0].mxu0 %v1330
  %v1431 = vpop.f32.mrb[0].mxu0
  %v1432 = vadd.f32 0.0, %v1431
  %v1433 = vpop.f32.mrb[0].mxu0
  %1434 = vmatprep.mubr.f32.mxu0 0.0
  %1435 = vmatmul.mubr.f32.gmra.mrb[0].mxu0 %v1331
  %v1436 = vpop.f32.mrb[0].mxu0
  %v1437 = vadd.f32 0.0, %v1436
  %v1438 = vpop.f32.mrb[0].mxu0
  %1439 = vmatprep.mubr.f32.mxu0 0.0
  %1440 = vmatmul.mubr.f32.gmra.mrb[0].mxu0 %v1332
  %v1441 = vpop.f32.mrb[0].mxu0
  %v1442 = vadd.f32 0.0, %v1441
  %v1443 = vpop.f32.mrb[0].mxu0
  %1444 = vmatprep.mubr.f32.mxu0 0.0
  %1445 = vmatmul.mubr.f32.gmra.mrb[0].mxu0 %v1333
  %v1446 = vpop.f32.mrb[0].mxu0
  %v1447 = vadd.f32 0.0, %v1446
  %v1448 = vpop.f32.mrb[0].mxu0
  %1449 = vmatprep.mubr.f32.mxu0 0.0
  %1450 = vmatmul.mubr.f32.gmra.mrb[0].mxu0 %v1334
  %v1451 = vpop.f32.mrb[0].mxu0
  %v1452 = vadd.f32 0.0, %v1451
  %v1453 = vpop.f32.mrb[0].mxu0
  %1454 = vmatprep.mubr.f32.mxu0 0.0
  %1455 = vmatmul.mubr.f32.gmra.mrb[0].mxu0 %v1335
  %v1456 = vpop.f32.mrb[0].mxu0
  %v1457 = vadd.f32 0.0, %v1456
  %v1458 = vpop.f32.mrb[0].mxu0
  %1459 = vmatprep.mubr.f32.mxu0 0.0
  %1460 = vmatmul.mubr.f32.gmra.mrb[0].mxu0 %v1336
  %v1461 = vpop.f32.mrb[0].mxu0
  %v1462 = vadd.f32 0.0, %v1461
  %v1463 = vpop.f32.mrb[0].mxu0
  %1464 = vmatprep.mubr.f32.mxu0 0.0
  %1465 = vmatmul.mubr.f32.gmra.mrb[0].mxu0 %v1337
  %v1466 = vpop.f32.mrb[0].mxu0
  %v1467 = vadd.f32 0.0, %v1466
  %v1468 = vpop.f32.mrb[0].mxu0
  %1469 = vdwg.mxu0
  %v1470 = vadd.f32 %v1318, %v1422
  %v1471 = vadd.f32 %v1319, %v1427
  %v1472 = vadd.f32 %v1320, %v1432
  %v1473 = vadd.f32 %v1321, %v1437
  %v1474 = vadd.f32 %v1322, %v1442
  %v1475 = vadd.f32 %v1323, %v1447
  %v1476 = vadd.f32 %v1324, %v1452
  %v1477 = vadd.f32 %v1325, %v1457
  %v1478 = vadd.f32 %v1326, %v1462
  %v1479 = vadd.f32 %v1327, %v1467
  %v1480 = vld [vmem:[%s4] sm:$0x1]
  %v1482 = vlaneseq
  %v1483 = vshrl.u32 %v1482, 7
  %v1484 = vsub.s32 0, %v1483
  %v1485 = vrot.slane %v1480, %v1484
  %v1487 = vadd.f32 %v1470, %v1485
  %v1488 = vadd.f32 %v1471, %v1485
  %v1489 = vadd.f32 %v1472, %v1485
  %v1490 = vadd.f32 %v1473, %v1485
  %v1491 = vadd.f32 %v1474, %v1485
  %v1492 = vadd.f32 %v1475, %v1485
  %v1493 = vadd.f32 %v1476, %v1485
  %v1494 = vadd.f32 %v1477, %v1485
  %v1495 = vadd.f32 %v1478, %v1485
  %v1496 = vadd.f32 %v1479, %v1485
  %v1497 = vmax.f32 %v1487, 0.0
  %v1498 = vmax.f32 %v1488, 0.0
  %v1499 = vmax.f32 %v1489, 0.0
  %v1500 = vmax.f32 %v1490, 0.0
  %v1501 = vmax.f32 %v1491, 0.0
  %v1502 = vmax.f32 %v1492, 0.0
  %v1503 = vmax.f32 %v1493, 0.0
  %v1504 = vmax.f32 %v1494, 0.0
  %v1505 = vmax.f32 %v1495, 0.0
  %v1506 = vmax.f32 %v1496, 0.0
  %1507 = vst [vmem:[#allocation3] sm:$0xff] %v1497
  %1508 = vst [vmem:[#allocation3 + $0x8] sm:$0xff] %v1498
  %1509 = vst [vmem:[#allocation3 + $0x10] sm:$0xff] %v1499
  %1510 = vst [vmem:[#allocation3 + $0x18] sm:$0xff] %v1500
  %1511 = vst [vmem:[#allocation3 + $0x20] sm:$0xff] %v1501
  %1512 = vst [vmem:[#allocation3 + $0x28] sm:$0xff] %v1502
  %1513 = vst [vmem:[#allocation3 + $0x30] sm:$0xff] %v1503
  %1514 = vst [vmem:[#allocation3 + $0x38] sm:$0xff] %v1504
  %1515 = vst [vmem:[#allocation3 + $0x40] sm:$0xff] %v1505
  %1516 = vst [vmem:[#allocation3 + $0x48] sm:$0xf] %v1506
  %v1517 = vld [vmem:[#allocation3] sm:$0xf]
  %v1518 = vld [vmem:[#allocation3 + $0x4] sm:$0xf]
  %v1519 = vmax.f32 %v1517, %v1518
  %v1520 = vld [vmem:[#allocation3 + $0x14] sm:$0xf]
  %v1521 = vld [vmem:[#allocation3 + $0x18] sm:$0xf]
  %v1522 = vmax.f32 %v1520, %v1521
  %v1523 = vmax.f32 %v1519, %v1522
  %v1524 = vld [vmem:[%s5] sm:$0xff]
  %v1525 = vld [vmem:[%s5 + $0x8] sm:$0xff]
  %v1526 = vld [vmem:[%s5 + $0x10] sm:$0xff]
  %v1527 = vld [vmem:[%s5 + $0x18] sm:$0xff]
  %v1528 = vld [vmem:[%s5 + $0x20] sm:$0xff]
  %v1529 = vld [vmem:[%s5 + $0x28] sm:$0xff]
  %v1530 = vld [vmem:[%s5 + $0x30] sm:$0xff]
  %v1531 = vld [vmem:[%s5 + $0x38] sm:$0xff]
  %v1532 = vld [vmem:[%s5 + $0x40] sm:$0xff]
  %v1533 = vld [vmem:[%s5 + $0x48] sm:$0xff]
  %v1534 = vld [vmem:[%s5 + $0x50] sm:$0xff]
  %v1535 = vld [vmem:[%s5 + $0x58] sm:$0xff]
  %v1536 = vld [vmem:[%s5 + $0x60] sm:$0xff]
  %v1537 = vld [vmem:[%s5 + $0x68] sm:$0xff]
  %v1538 = vld [vmem:[%s5 + $0x70] sm:$0xff]
  %v1539 = vld [vmem:[%s5 + $0x78] sm:$0xff]
  %v1540 = vld [vmem:[#allocation3 + $0x8] sm:$0xf]
  %v1541 = vld [vmem:[#allocation3 + $0xc] sm:$0xf]
  %v1542 = vmax.f32 %v1540, %v1541
  %v1543 = vld [vmem:[#allocation3 + $0x1c] sm:$0xf]
  %v1544 = vld [vmem:[#allocation3 + $0x20] sm:$0xf]
  %v1545 = vmax.f32 %v1543, %v1544
  %v1546 = vmax.f32 %v1542, %v1545
  %s1547 = scalar_lea.vmem %s5, 128
  %v1548 = vld [vmem:[%s1547] sm:$0xff]
  %v1549 = vld [vmem:[%s1547 + $0x8] sm:$0xff]
  %v1550 = vld [vmem:[%s1547 + $0x10] sm:$0xff]
  %v1551 = vld [vmem:[%s1547 + $0x18] sm:$0xff]
  %v1552 = vld [vmem:[%s1547 + $0x20] sm:$0xff]
  %v1553 = vld [vmem:[%s1547 + $0x28] sm:$0xff]
  %v1554 = vld [vmem:[%s1547 + $0x30] sm:$0xff]
  %v1555 = vld [vmem:[%s1547 + $0x38] sm:$0xff]
  %v1556 = vld [vmem:[%s1547 + $0x40] sm:$0xff]
  %v1557 = vld [vmem:[%s1547 + $0x48] sm:$0xff]
  %v1558 = vld [vmem:[%s1547 + $0x50] sm:$0xff]
  %v1559 = vld [vmem:[%s1547 + $0x58] sm:$0xff]
  %v1560 = vld [vmem:[%s1547 + $0x60] sm:$0xff]
  %v1561 = vld [vmem:[%s1547 + $0x68] sm:$0xff]
  %v1562 = vld [vmem:[%s1547 + $0x70] sm:$0xff]
  %v1563 = vld [vmem:[%s1547 + $0x78] sm:$0xff]
  %1564 = vmatprep.subr.mxu0 0.0
  %1565 = vmatpush1.msra.mxu0 %v1548
  %1566 = vmatprep.subr.mxu0 0.0
  %1567 = vmatpush1.msra.mxu0 %v1549
  %1568 = vmatprep.subr.mxu0 0.0
  %1569 = vmatpush1.msra.mxu0 %v1550
  %1570 = vmatprep.subr.mxu0 0.0
  %1571 = vmatpush1.msra.mxu0 %v1551
  %1572 = vmatprep.subr.mxu0 0.0
  %1573 = vmatpush1.msra.mxu0 %v1552
  %1574 = vmatprep.subr.mxu0 0.0
  %1575 = vmatpush1.msra.mxu0 %v1553
  %1576 = vmatprep.subr.mxu0 0.0
  %1577 = vmatpush1.msra.mxu0 %v1554
  %1578 = vmatprep.subr.mxu0 0.0
  %1579 = vmatpush1.msra.mxu0 %v1555
  %1580 = vmatprep.subr.mxu0 0.0
  %1581 = vmatpush1.msra.mxu0 %v1556
  %1582 = vmatprep.subr.mxu0 0.0
  %1583 = vmatpush1.msra.mxu0 %v1557
  %1584 = vmatprep.subr.mxu0 0.0
  %1585 = vmatpush1.msra.mxu0 %v1558
  %1586 = vmatprep.subr.mxu0 0.0
  %1587 = vmatpush1.msra.mxu0 %v1559
  %1588 = vmatprep.subr.mxu0 0.0
  %1589 = vmatpush1.msra.mxu0 %v1560
  %1590 = vmatprep.subr.mxu0 0.0
  %1591 = vmatpush1.msra.mxu0 %v1561
  %1592 = vmatprep.subr.mxu0 0.0
  %1593 = vmatpush1.msra.mxu0 %v1562
  %1594 = vmatprep.subr.mxu0 0.0
  %1595 = vmatpush1.msra.mxu0 %v1563
  %1596 = vmatprep.subr.mxu0 0.0
  %1597 = vmatpush1.msra.mxu0 0.0
  %1598 = vmatprep.subr.mxu0 0.0
  %1599 = vmatpush1.msra.mxu0 0.0
  %1600 = vmatprep.subr.mxu0 0.0
  %1601 = vmatpush1.msra.mxu0 0.0
  %1602 = vmatprep.subr.mxu0 0.0
  %1603 = vmatpush1.msra.mxu0 0.0
  %1604 = vmatprep.subr.mxu0 0.0
  %1605 = vmatpush1.msra.mxu0 0.0
  %1606 = vmatprep.subr.mxu0 0.0
  %1607 = vmatpush1.msra.mxu0 0.0
  %1608 = vmatprep.subr.mxu0 0.0
  %1609 = vmatpush1.msra.mxu0 0.0
  %1610 = vmatprep.subr.mxu0 0.0
  %1611 = vmatpush1.msra.mxu0 0.0
  %1612 = vmatprep.subr.mxu0 0.0
  %1613 = vmatpush1.msra.mxu0 0.0
  %1614 = vmatprep.subr.mxu0 0.0
  %1615 = vmatpush1.msra.mxu0 0.0
  %1616 = vmatprep.subr.mxu0 0.0
  %1617 = vmatpush1.msra.mxu0 0.0
  %1618 = vmatprep.subr.mxu0 0.0
  %1619 = vmatpush1.msra.mxu0 0.0
  %1620 = vmatprep.subr.mxu0 0.0
  %1621 = vmatpush1.msra.mxu0 0.0
  %1622 = vmatprep.subr.mxu0 0.0
  %1623 = vmatpush1.msra.mxu0 0.0
  %1624 = vmatprep.subr.mxu0 0.0
  %1625 = vmatpush1.msra.mxu0 0.0
  %1626 = vmatprep.subr.mxu0 0.0
  %1627 = vmatpush1.msra.mxu0 0.0
  %1628 = vmatprep.mubr.f32.mxu0 0.0
  %1629 = vmatmul.mubr.f32.gmra.mrb[0].mxu0 %v1546
  %v1630 = vpop.f32.mrb[0].mxu0
  %v1631 = vadd.f32 0.0, %v1630
  %v1632 = vpop.f32.mrb[0].mxu0
  %1633 = vdwg.mxu0
  %1634 = vmatprep.subr.mxu0 0.0
  %1635 = vmatpush1.msra.mxu0 %v1524
  %1636 = vmatprep.subr.mxu0 0.0
  %1637 = vmatpush1.msra.mxu0 %v1525
  %1638 = vmatprep.subr.mxu0 0.0
  %1639 = vmatpush1.msra.mxu0 %v1526
  %1640 = vmatprep.subr.mxu0 0.0
  %1641 = vmatpush1.msra.mxu0 %v1527
  %1642 = vmatprep.subr.mxu0 0.0
  %1643 = vmatpush1.msra.mxu0 %v1528
  %1644 = vmatprep.subr.mxu0 0.0
  %1645 = vmatpush1.msra.mxu0 %v1529
  %1646 = vmatprep.subr.mxu0 0.0
  %1647 = vmatpush1.msra.mxu0 %v1530
  %1648 = vmatprep.subr.mxu0 0.0
  %1649 = vmatpush1.msra.mxu0 %v1531
  %1650 = vmatprep.subr.mxu0 0.0
  %1651 = vmatpush1.msra.mxu0 %v1532
  %1652 = vmatprep.subr.mxu0 0.0
  %1653 = vmatpush1.msra.mxu0 %v1533
  %1654 = vmatprep.subr.mxu0 0.0
  %1655 = vmatpush1.msra.mxu0 %v1534
  %1656 = vmatprep.subr.mxu0 0.0
  %1657 = vmatpush1.msra.mxu0 %v1535
  %1658 = vmatprep.subr.mxu0 0.0
  %1659 = vmatpush1.msra.mxu0 %v1536
  %1660 = vmatprep.subr.mxu0 0.0
  %1661 = vmatpush1.msra.mxu0 %v1537
  %1662 = vmatprep.subr.mxu0 0.0
  %1663 = vmatpush1.msra.mxu0 %v1538
  %1664 = vmatprep.subr.mxu0 0.0
  %1665 = vmatpush1.msra.mxu0 %v1539
  %1666 = vmatprep.subr.mxu0 0.0
  %1667 = vmatpush1.msra.mxu0 0.0
  %1668 = vmatprep.subr.mxu0 0.0
  %1669 = vmatpush1.msra.mxu0 0.0
  %1670 = vmatprep.subr.mxu0 0.0
  %1671 = vmatpush1.msra.mxu0 0.0
  %1672 = vmatprep.subr.mxu0 0.0
  %1673 = vmatpush1.msra.mxu0 0.0
  %1674 = vmatprep.subr.mxu0 0.0
  %1675 = vmatpush1.msra.mxu0 0.0
  %1676 = vmatprep.subr.mxu0 0.0
  %1677 = vmatpush1.msra.mxu0 0.0
  %1678 = vmatprep.subr.mxu0 0.0
  %1679 = vmatpush1.msra.mxu0 0.0
  %1680 = vmatprep.subr.mxu0 0.0
  %1681 = vmatpush1.msra.mxu0 0.0
  %1682 = vmatprep.subr.mxu0 0.0
  %1683 = vmatpush1.msra.mxu0 0.0
  %1684 = vmatprep.subr.mxu0 0.0
  %1685 = vmatpush1.msra.mxu0 0.0
  %1686 = vmatprep.subr.mxu0 0.0
  %1687 = vmatpush1.msra.mxu0 0.0
  %1688 = vmatprep.subr.mxu0 0.0
  %1689 = vmatpush1.msra.mxu0 0.0
  %1690 = vmatprep.subr.mxu0 0.0
  %1691 = vmatpush1.msra.mxu0 0.0
  %1692 = vmatprep.subr.mxu0 0.0
  %1693 = vmatpush1.msra.mxu0 0.0
  %1694 = vmatprep.subr.mxu0 0.0
  %1695 = vmatpush1.msra.mxu0 0.0
  %1696 = vmatprep.subr.mxu0 0.0
  %1697 = vmatpush1.msra.mxu0 0.0
  %1698 = vmatprep.mubr.f32.mxu0 0.0
  %1699 = vmatmul.mubr.f32.gmra.mrb[0].mxu0 %v1523
  %v1700 = vpop.f32.mrb[0].mxu0
  %v1701 = vadd.f32 %v1631, %v1700
  %v1702 = vpop.f32.mrb[0].mxu0
  %1703 = vdwg.mxu0
  %v1704 = vld [vmem:[#allocation3 + $0x28] sm:$0xf]
  %v1705 = vld [vmem:[#allocation3 + $0x2c] sm:$0xf]
  %v1706 = vmax.f32 %v1704, %v1705
  %v1707 = vld [vmem:[#allocation3 + $0x3c] sm:$0xf]
  %v1708 = vld [vmem:[#allocation3 + $0x40] sm:$0xf]
  %v1709 = vmax.f32 %v1707, %v1708
  %v1710 = vmax.f32 %v1706, %v1709
  %s1711 = scalar_lea.vmem %s5, 256
  %v1712 = vld [vmem:[%s1711] sm:$0xff]
  %v1713 = vld [vmem:[%s1711 + $0x8] sm:$0xff]
  %v1714 = vld [vmem:[%s1711 + $0x10] sm:$0xff]
  %v1715 = vld [vmem:[%s1711 + $0x18] sm:$0xff]
  %v1716 = vld [vmem:[%s1711 + $0x20] sm:$0xff]
  %v1717 = vld [vmem:[%s1711 + $0x28] sm:$0xff]
  %v1718 = vld [vmem:[%s1711 + $0x30] sm:$0xff]
  %v1719 = vld [vmem:[%s1711 + $0x38] sm:$0xff]
  %v1720 = vld [vmem:[%s1711 + $0x40] sm:$0xff]
  %v1721 = vld [vmem:[%s1711 + $0x48] sm:$0xff]
  %v1722 = vld [vmem:[%s1711 + $0x50] sm:$0xff]
  %v1723 = vld [vmem:[%s1711 + $0x58] sm:$0xff]
  %v1724 = vld [vmem:[%s1711 + $0x60] sm:$0xff]
  %v1725 = vld [vmem:[%s1711 + $0x68] sm:$0xff]
  %v1726 = vld [vmem:[%s1711 + $0x70] sm:$0xff]
  %v1727 = vld [vmem:[%s1711 + $0x78] sm:$0xff]
  %1728 = vmatprep.subr.mxu0 0.0
  %1729 = vmatpush1.msra.mxu0 %v1712
  %1730 = vmatprep.subr.mxu0 0.0
  %1731 = vmatpush1.msra.mxu0 %v1713
  %1732 = vmatprep.subr.mxu0 0.0
  %1733 = vmatpush1.msra.mxu0 %v1714
  %1734 = vmatprep.subr.mxu0 0.0
  %1735 = vmatpush1.msra.mxu0 %v1715
  %1736 = vmatprep.subr.mxu0 0.0
  %1737 = vmatpush1.msra.mxu0 %v1716
  %1738 = vmatprep.subr.mxu0 0.0
  %1739 = vmatpush1.msra.mxu0 %v1717
  %1740 = vmatprep.subr.mxu0 0.0
  %1741 = vmatpush1.msra.mxu0 %v1718
  %1742 = vmatprep.subr.mxu0 0.0
  %1743 = vmatpush1.msra.mxu0 %v1719
  %1744 = vmatprep.subr.mxu0 0.0
  %1745 = vmatpush1.msra.mxu0 %v1720
  %1746 = vmatprep.subr.mxu0 0.0
  %1747 = vmatpush1.msra.mxu0 %v1721
  %1748 = vmatprep.subr.mxu0 0.0
  %1749 = vmatpush1.msra.mxu0 %v1722
  %1750 = vmatprep.subr.mxu0 0.0
  %1751 = vmatpush1.msra.mxu0 %v1723
  %1752 = vmatprep.subr.mxu0 0.0
  %1753 = vmatpush1.msra.mxu0 %v1724
  %1754 = vmatprep.subr.mxu0 0.0
  %1755 = vmatpush1.msra.mxu0 %v1725
  %1756 = vmatprep.subr.mxu0 0.0
  %1757 = vmatpush1.msra.mxu0 %v1726
  %1758 = vmatprep.subr.mxu0 0.0
  %1759 = vmatpush1.msra.mxu0 %v1727
  %1760 = vmatprep.subr.mxu0 0.0
  %1761 = vmatpush1.msra.mxu0 0.0
  %1762 = vmatprep.subr.mxu0 0.0
  %1763 = vmatpush1.msra.mxu0 0.0
  %1764 = vmatprep.subr.mxu0 0.0
  %1765 = vmatpush1.msra.mxu0 0.0
  %1766 = vmatprep.subr.mxu0 0.0
  %1767 = vmatpush1.msra.mxu0 0.0
  %1768 = vmatprep.subr.mxu0 0.0
  %1769 = vmatpush1.msra.mxu0 0.0
  %1770 = vmatprep.subr.mxu0 0.0
  %1771 = vmatpush1.msra.mxu0 0.0
  %1772 = vmatprep.subr.mxu0 0.0
  %1773 = vmatpush1.msra.mxu0 0.0
  %1774 = vmatprep.subr.mxu0 0.0
  %1775 = vmatpush1.msra.mxu0 0.0
  %1776 = vmatprep.subr.mxu0 0.0
  %1777 = vmatpush1.msra.mxu0 0.0
  %1778 = vmatprep.subr.mxu0 0.0
  %1779 = vmatpush1.msra.mxu0 0.0
  %1780 = vmatprep.subr.mxu0 0.0
  %1781 = vmatpush1.msra.mxu0 0.0
  %1782 = vmatprep.subr.mxu0 0.0
  %1783 = vmatpush1.msra.mxu0 0.0
  %1784 = vmatprep.subr.mxu0 0.0
  %1785 = vmatpush1.msra.mxu0 0.0
  %1786 = vmatprep.subr.mxu0 0.0
  %1787 = vmatpush1.msra.mxu0 0.0
  %1788 = vmatprep.subr.mxu0 0.0
  %1789 = vmatpush1.msra.mxu0 0.0
  %1790 = vmatprep.subr.mxu0 0.0
  %1791 = vmatpush1.msra.mxu0 0.0
  %1792 = vmatprep.mubr.f32.mxu0 0.0
  %1793 = vmatmul.mubr.f32.gmra.mrb[0].mxu0 %v1710
  %v1794 = vpop.f32.mrb[0].mxu0
  %v1795 = vadd.f32 0.0, %v1794
  %v1796 = vpop.f32.mrb[0].mxu0
  %1797 = vdwg.mxu0
  %v1798 = vadd.f32 %v1701, %v1795
  %v1799 = vld [vmem:[#allocation3 + $0x30] sm:$0xf]
  %v1800 = vld [vmem:[#allocation3 + $0x34] sm:$0xf]
  %v1801 = vmax.f32 %v1799, %v1800
  %v1802 = vld [vmem:[#allocation3 + $0x44] sm:$0xf]
  %v1803 = vld [vmem:[#allocation3 + $0x48] sm:$0xf]
  %v1804 = vmax.f32 %v1802, %v1803
  %v1805 = vmax.f32 %v1801, %v1804
  %s1806 = scalar_lea.vmem %s5, 384
  %v1807 = vld [vmem:[%s1806] sm:$0xff]
  %v1808 = vld [vmem:[%s1806 + $0x8] sm:$0xff]
  %v1809 = vld [vmem:[%s1806 + $0x10] sm:$0xff]
  %v1810 = vld [vmem:[%s1806 + $0x18] sm:$0xff]
  %v1811 = vld [vmem:[%s1806 + $0x20] sm:$0xff]
  %v1812 = vld [vmem:[%s1806 + $0x28] sm:$0xff]
  %v1813 = vld [vmem:[%s1806 + $0x30] sm:$0xff]
  %v1814 = vld [vmem:[%s1806 + $0x38] sm:$0xff]
  %v1815 = vld [vmem:[%s1806 + $0x40] sm:$0xff]
  %v1816 = vld [vmem:[%s1806 + $0x48] sm:$0xff]
  %v1817 = vld [vmem:[%s1806 + $0x50] sm:$0xff]
  %v1818 = vld [vmem:[%s1806 + $0x58] sm:$0xff]
  %v1819 = vld [vmem:[%s1806 + $0x60] sm:$0xff]
  %v1820 = vld [vmem:[%s1806 + $0x68] sm:$0xff]
  %v1821 = vld [vmem:[%s1806 + $0x70] sm:$0xff]
  %v1822 = vld [vmem:[%s1806 + $0x78] sm:$0xff]
  %1823 = vmatprep.subr.mxu0 0.0
  %1824 = vmatpush1.msra.mxu0 %v1807
  %1825 = vmatprep.subr.mxu0 0.0
  %1826 = vmatpush1.msra.mxu0 %v1808
  %1827 = vmatprep.subr.mxu0 0.0
  %1828 = vmatpush1.msra.mxu0 %v1809
  %1829 = vmatprep.subr.mxu0 0.0
  %1830 = vmatpush1.msra.mxu0 %v1810
  %1831 = vmatprep.subr.mxu0 0.0
  %1832 = vmatpush1.msra.mxu0 %v1811
  %1833 = vmatprep.subr.mxu0 0.0
  %1834 = vmatpush1.msra.mxu0 %v1812
  %1835 = vmatprep.subr.mxu0 0.0
  %1836 = vmatpush1.msra.mxu0 %v1813
  %1837 = vmatprep.subr.mxu0 0.0
  %1838 = vmatpush1.msra.mxu0 %v1814
  %1839 = vmatprep.subr.mxu0 0.0
  %1840 = vmatpush1.msra.mxu0 %v1815
  %1841 = vmatprep.subr.mxu0 0.0
  %1842 = vmatpush1.msra.mxu0 %v1816
  %1843 = vmatprep.subr.mxu0 0.0
  %1844 = vmatpush1.msra.mxu0 %v1817
  %1845 = vmatprep.subr.mxu0 0.0
  %1846 = vmatpush1.msra.mxu0 %v1818
  %1847 = vmatprep.subr.mxu0 0.0
  %1848 = vmatpush1.msra.mxu0 %v1819
  %1849 = vmatprep.subr.mxu0 0.0
  %1850 = vmatpush1.msra.mxu0 %v1820
  %1851 = vmatprep.subr.mxu0 0.0
  %1852 = vmatpush1.msra.mxu0 %v1821
  %1853 = vmatprep.subr.mxu0 0.0
  %1854 = vmatpush1.msra.mxu0 %v1822
  %1855 = vmatprep.subr.mxu0 0.0
  %1856 = vmatpush1.msra.mxu0 0.0
  %1857 = vmatprep.subr.mxu0 0.0
  %1858 = vmatpush1.msra.mxu0 0.0
  %1859 = vmatprep.subr.mxu0 0.0
  %1860 = vmatpush1.msra.mxu0 0.0
  %1861 = vmatprep.subr.mxu0 0.0
  %1862 = vmatpush1.msra.mxu0 0.0
  %1863 = vmatprep.subr.mxu0 0.0
  %1864 = vmatpush1.msra.mxu0 0.0
  %1865 = vmatprep.subr.mxu0 0.0
  %1866 = vmatpush1.msra.mxu0 0.0
  %1867 = vmatprep.subr.mxu0 0.0
  %1868 = vmatpush1.msra.mxu0 0.0
  %1869 = vmatprep.subr.mxu0 0.0
  %1870 = vmatpush1.msra.mxu0 0.0
  %1871 = vmatprep.subr.mxu0 0.0
  %1872 = vmatpush1.msra.mxu0 0.0
  %1873 = vmatprep.subr.mxu0 0.0
  %1874 = vmatpush1.msra.mxu0 0.0
  %1875 = vmatprep.subr.mxu0 0.0
  %1876 = vmatpush1.msra.mxu0 0.0
  %1877 = vmatprep.subr.mxu0 0.0
  %1878 = vmatpush1.msra.mxu0 0.0
  %1879 = vmatprep.subr.mxu0 0.0
  %1880 = vmatpush1.msra.mxu0 0.0
  %1881 = vmatprep.subr.mxu0 0.0
  %1882 = vmatpush1.msra.mxu0 0.0
  %1883 = vmatprep.subr.mxu0 0.0
  %1884 = vmatpush1.msra.mxu0 0.0
  %1885 = vmatprep.subr.mxu0 0.0
  %1886 = vmatpush1.msra.mxu0 0.0
  %1887 = vmatprep.mubr.f32.mxu0 0.0
  %1888 = vmatmul.mubr.f32.gmra.mrb[0].mxu0 %v1805
  %v1889 = vpop.f32.mrb[0].mxu0
  %v1890 = vadd.f32 0.0, %v1889
  %v1891 = vpop.f32.mrb[0].mxu0
  %1892 = vdwg.mxu0
  %v1893 = vadd.f32 %v1798, %v1890
  %v1894 = vld [vmem:[%s6] sm:$0x1]
  %v1896 = vlaneseq
  %v1897 = vshrl.u32 %v1896, 7
  %v1898 = vsub.s32 0, %v1897
  %v1899 = vrot.slane %v1894, %v1898
  %v1901 = vadd.f32 %v1893, %v1899
  %v1902 = vmax.f32 %v1901, 0.0
  %v1903 = vld [vmem:[%s7] sm:$0xff]
  %v1904 = vld [vmem:[%s7 + $0x8] sm:$0xff]
  %v1905 = vld [vmem:[%s7 + $0x10] sm:$0xff]
  %v1906 = vld [vmem:[%s7 + $0x18] sm:$0xff]
  %v1907 = vld [vmem:[%s7 + $0x20] sm:$0xff]
  %v1908 = vld [vmem:[%s7 + $0x28] sm:$0xff]
  %v1909 = vld [vmem:[%s7 + $0x30] sm:$0xff]
  %v1910 = vld [vmem:[%s7 + $0x38] sm:$0xff]
  %v1911 = vld [vmem:[%s7 + $0x40] sm:$0xff]
  %v1912 = vld [vmem:[%s7 + $0x48] sm:$0xff]
  %v1913 = vld [vmem:[%s7 + $0x50] sm:$0xff]
  %v1914 = vld [vmem:[%s7 + $0x58] sm:$0xff]
  %v1915 = vld [vmem:[%s7 + $0x60] sm:$0xff]
  %v1916 = vld [vmem:[%s7 + $0x68] sm:$0xff]
  %v1917 = vld [vmem:[%s7 + $0x70] sm:$0xff]
  %v1918 = vld [vmem:[%s7 + $0x78] sm:$0xff]
  %v1919 = vld [vmem:[%s8] sm:$0x1]
  %v1921 = vlaneseq
  %v1922 = vshrl.u32 %v1921, 7
  %v1923 = vsub.s32 0, %v1922
  %v1924 = vrot.slane %v1919, %v1923
  %1926 = vmatprep.subr.mxu0 0.0
  %1927 = vmatpush1.msra.mxu0 %v1903
  %1928 = vmatprep.subr.mxu0 0.0
  %1929 = vmatpush1.msra.mxu0 %v1904
  %1930 = vmatprep.subr.mxu0 0.0
  %1931 = vmatpush1.msra.mxu0 %v1905
  %1932 = vmatprep.subr.mxu0 0.0
  %1933 = vmatpush1.msra.mxu0 %v1906
  %1934 = vmatprep.subr.mxu0 0.0
  %1935 = vmatpush1.msra.mxu0 %v1907
  %1936 = vmatprep.subr.mxu0 0.0
  %1937 = vmatpush1.msra.mxu0 %v1908
  %1938 = vmatprep.subr.mxu0 0.0
  %1939 = vmatpush1.msra.mxu0 %v1909
  %1940 = vmatprep.subr.mxu0 0.0
  %1941 = vmatpush1.msra.mxu0 %v1910
  %1942 = vmatprep.subr.mxu0 0.0
  %1943 = vmatpush1.msra.mxu0 %v1911
  %1944 = vmatprep.subr.mxu0 0.0
  %1945 = vmatpush1.msra.mxu0 %v1912
  %1946 = vmatprep.subr.mxu0 0.0
  %1947 = vmatpush1.msra.mxu0 %v1913
  %1948 = vmatprep.subr.mxu0 0.0
  %1949 = vmatpush1.msra.mxu0 %v1914
  %1950 = vmatprep.subr.mxu0 0.0
  %1951 = vmatpush1.msra.mxu0 %v1915
  %1952 = vmatprep.subr.mxu0 0.0
  %1953 = vmatpush1.msra.mxu0 %v1916
  %1954 = vmatprep.subr.mxu0 0.0
  %1955 = vmatpush1.msra.mxu0 %v1917
  %1956 = vmatprep.subr.mxu0 0.0
  %1957 = vmatpush1.msra.mxu0 %v1918
  %1958 = vmatprep.subr.mxu0 0.0
  %1959 = vmatpush1.msra.mxu0 0.0
  %1960 = vmatprep.subr.mxu0 0.0
  %1961 = vmatpush1.msra.mxu0 0.0
  %1962 = vmatprep.subr.mxu0 0.0
  %1963 = vmatpush1.msra.mxu0 0.0
  %1964 = vmatprep.subr.mxu0 0.0
  %1965 = vmatpush1.msra.mxu0 0.0
  %1966 = vmatprep.subr.mxu0 0.0
  %1967 = vmatpush1.msra.mxu0 0.0
  %1968 = vmatprep.subr.mxu0 0.0
  %1969 = vmatpush1.msra.mxu0 0.0
  %1970 = vmatprep.subr.mxu0 0.0
  %1971 = vmatpush1.msra.mxu0 0.0
  %1972 = vmatprep.subr.mxu0 0.0
  %1973 = vmatpush1.msra.mxu0 0.0
  %1974 = vmatprep.subr.mxu0 0.0
  %1975 = vmatpush1.msra.mxu0 0.0
  %1976 = vmatprep.subr.mxu0 0.0
  %1977 = vmatpush1.msra.mxu0 0.0
  %1978 = vmatprep.subr.mxu0 0.0
  %1979 = vmatpush1.msra.mxu0 0.0
  %1980 = vmatprep.subr.mxu0 0.0
  %1981 = vmatpush1.msra.mxu0 0.0
  %1982 = vmatprep.subr.mxu0 0.0
  %1983 = vmatpush1.msra.mxu0 0.0
  %1984 = vmatprep.subr.mxu0 0.0
  %1985 = vmatpush1.msra.mxu0 0.0
  %1986 = vmatprep.subr.mxu0 0.0
  %1987 = vmatpush1.msra.mxu0 0.0
  %1988 = vmatprep.subr.mxu0 0.0
  %1989 = vmatpush1.msra.mxu0 0.0
  %1990 = vmatprep.mubr.f32.mxu0 0.0
  %1991 = vmatmul.mubr.f32.gmra.mrb[0].mxu0 %v1902
  %v1992 = vpop.f32.mrb[0].mxu0
  %v1993 = vadd.f32 %v1924, %v1992
  %v1994 = vpop.f32.mrb[0].mxu0
  %1995 = vdwg.mxu0
  %1996 = vst [vmem:[%s12] sm:$0xf] %v1993
  %v1997 = vld [vmem:[%s9] sm:$0xf]
  %v1998 = vmul.f32 %v1993, %v1997
  %v1999 = vld [vmem:[%s10] sm:$0x3]
  %vm2000 = vcmask 31744
  %v2002 = vsel %vm2000, %v1999, 0
  %vm2004 = vcmask 1043456
  %v2006 = vsel %vm2004, %v1998, 0
  %2008 = vmatprep.subr.mxu0 0.0
  %2009 = vmatpush1.msra.mxu0 %v2006
  %2010 = vmatprep.subr.mxu0 0.0
  %2011 = vmatpush1.msra.mxu0 0.0
  %2012 = vmatprep.subr.mxu0 0.0
  %2013 = vmatpush1.msra.mxu0 0.0
  %2014 = vmatprep.subr.mxu0 0.0
  %2015 = vmatpush1.msra.mxu0 0.0
  %2016 = vmatprep.subr.mxu0 0.0
  %2017 = vmatpush1.msra.mxu0 0.0
  %2018 = vmatprep.subr.mxu0 0.0
  %2019 = vmatpush1.msra.mxu0 0.0
  %2020 = vmatprep.subr.mxu0 0.0
  %2021 = vmatpush1.msra.mxu0 0.0
  %2022 = vmatprep.subr.mxu0 0.0
  %2023 = vmatpush1.msra.mxu0 0.0
  %2024 = vmatprep.subr.mxu0 0.0
  %2025 = vmatpush1.msra.mxu0 0.0
  %2026 = vmatprep.subr.mxu0 0.0
  %2027 = vmatpush1.msra.mxu0 0.0
  %2028 = vmatprep.subr.mxu0 0.0
  %2029 = vmatpush1.msra.mxu0 0.0
  %2030 = vmatprep.subr.mxu0 0.0
  %2031 = vmatpush1.msra.mxu0 0.0
  %2032 = vmatprep.subr.mxu0 0.0
  %2033 = vmatpush1.msra.mxu0 0.0
  %2034 = vmatprep.subr.mxu0 0.0
  %2035 = vmatpush1.msra.mxu0 0.0
  %2036 = vmatprep.subr.mxu0 0.0
  %2037 = vmatpush1.msra.mxu0 0.0
  %2038 = vmatprep.subr.mxu0 0.0
  %2039 = vmatpush1.msra.mxu0 0.0
  %2040 = vmatprep.subr.mxu0 0.0
  %2041 = vmatpush1.msra.mxu0 0.0
  %2042 = vmatprep.subr.mxu0 0.0
  %2043 = vmatpush1.msra.mxu0 0.0
  %2044 = vmatprep.subr.mxu0 0.0
  %2045 = vmatpush1.msra.mxu0 0.0
  %2046 = vmatprep.subr.mxu0 0.0
  %2047 = vmatpush1.msra.mxu0 0.0
  %2048 = vmatprep.subr.mxu0 0.0
  %2049 = vmatpush1.msra.mxu0 0.0
  %2050 = vmatprep.subr.mxu0 0.0
  %2051 = vmatpush1.msra.mxu0 0.0
  %2052 = vmatprep.subr.mxu0 0.0
  %2053 = vmatpush1.msra.mxu0 0.0
  %2054 = vmatprep.subr.mxu0 0.0
  %2055 = vmatpush1.msra.mxu0 0.0
  %2056 = vmatprep.subr.mxu0 0.0
  %2057 = vmatpush1.msra.mxu0 0.0
  %2058 = vmatprep.subr.mxu0 0.0
  %2059 = vmatpush1.msra.mxu0 0.0
  %2060 = vmatprep.subr.mxu0 0.0
  %2061 = vmatpush1.msra.mxu0 0.0
  %2062 = vmatprep.subr.mxu0 0.0
  %2063 = vmatpush1.msra.mxu0 0.0
  %2064 = vmatprep.subr.mxu0 0.0
  %2065 = vmatpush1.msra.mxu0 0.0
  %2066 = vmatprep.subr.mxu0 0.0
  %2067 = vmatpush1.msra.mxu0 0.0
  %2068 = vmatprep.subr.mxu0 0.0
  %2069 = vmatpush1.msra.mxu0 0.0
  %2070 = vmatprep.subr.mxu0 0.0
  %2071 = vmatpush1.msra.mxu0 0.0
  %2072 = vmatprep.mubr.f32.mxu0 0.0
  %2073 = vmatmul.mubr.f32.gmra.mrb[0].mxu0 %v2002
  %v2074 = vpop.f32.mrb[0].mxu0
  %v2075 = vadd.f32 0.0, %v2074
  %v2076 = vpop.f32.mrb[0].mxu0
  %2077 = vdwg.mxu0
  %vm2078 = vcmask 1041408
  %v2079 = vsel %vm2078, %v2075, 0.0
  %2080 = vadd.xlane.f32.xlu0 %v2079
  %v2081 = vpop.xlane.xlu0 %2080
  %v2082 = vld [vmem:[#allocation4] sm:$0x1]
  %v2084 = vlaneseq
  %v2085 = vshrl.u32 %v2084, 7
  %v2086 = vsub.s32 0, %v2085
  %v2087 = vrot.slane %v2082, %v2086
  %v2089 = vadd.f32 %v2081, %v2087
  %v2090 = vmax.f32 %v2089, 0.0
  %v2091 = vxor.u32 %v2090, 2147483648
  %v2092 = vmul.f32 %v2091, 1.442695
  %v2093 = vpow.pop %v2092
  %v2094 = vadd.f32 %v2093, 1.0
  %v2095 = vrcp.pop %v2094
  %v2096 = vmul.f32 1.0, %v2095
  %2098 = vset.pattern.permute.xlu0 0
  %2099 = vperm.xlu0 %2098, %v2096
  %v2100 = vpop.permute.xlu0 %2099
  %2102 = vst [vmem:[%s13] sm:$0x3] %v2100
  // Predicated region
  $region50: #{_wsn_forward.1} parent=0 // pred_check
    _
  $region51: #{_wsn_forward.1} parent=0 // pred_check_branch
    %2104 = sbr.rel (0) target = $region53
  $region52: #{_wsn_forward.1} parent=0 // pred_region
    _
  $region53: #{_wsn_forward.1} parent=0 // pred_fallthru
    _
  // Predicated region
  $region54: #{_wsn_forward.1} parent=0 // pred_check
    _
  $region55: #{_wsn_forward.1} parent=0 // pred_check_branch
    %2106 = sbr.rel (0) target = $region57
  $region56: #{_wsn_forward.1} parent=0 // pred_region
    _
  $region57: #{_wsn_forward.1} parent=0 // pred_fallthru
    _
  // Predicated region
  $region58: #{_wsn_forward.1} parent=0 // pred_check
    _
  $region59: #{_wsn_forward.1} parent=0 // pred_check_branch
    %2108 = sbr.rel (0) target = $region61
  $region60: #{_wsn_forward.1} parent=0 // pred_region
    _
  $region61: #{_wsn_forward.1} parent=0 // pred_fallthru
    _
  // Predicated region
  $region62: #{_wsn_forward.1} parent=0 // pred_check
    _
  $region63: #{_wsn_forward.1} parent=0 // pred_check_branch
    %2110 = sbr.rel (0) target = $region65
  $region64: #{_wsn_forward.1} parent=0 // pred_region
    _
  $region65: #{_wsn_forward.1} parent=0 // pred_fallthru
    _

</llo_original>
